<compile_context>
chip_gen: v7x
topology: tpu7x:2x2x1
jax: 0.10.0
libtpu: 0.0.40
codegen_flags: <defaults>
</compile_context>

<pallas_src>
import jax
import jax.numpy as jnp
from jax import lax
from jax.experimental import pallas as pl
from jax.experimental.pallas import tpu as pltpu


def attention_block_forward(x_ncdhw, params, eps=1e-5, tile_q=512, tile_k=512):
    # TODO(synk): the ConvTranspose3d projection_shortcut / strides!=1 ('UP') path
    # is not implemented; only the SAME (strides=1, identity shortcut) config.
    B, C, D, H, W = x_ncdhw.shape
    N = D * H * W
    x = x_ncdhw.reshape(B, C, N)                      # pure reshape of NCDHW

    tq = min(tile_q, N)
    tk = min(tile_k, N)
    assert N % tq == 0 and N % tk == 0, "spatial size must tile evenly"
    assert (tq % 128 == 0 or tq == N) and (tk % 128 == 0 or tk == N)
    num_q = N // tq
    num_kv = N // tk

    # training-mode BatchNorm3d batch statistics (biased variance), folded to a
    # per-channel scale/shift applied inside the kernel.
    mean = jnp.mean(x, axis=(0, 2))
    var = jnp.mean((x - mean[None, :, None]) ** 2, axis=(0, 2))
    inv = params["gamma"] * lax.rsqrt(var + eps)
    scale = inv.reshape(C, 1).astype(jnp.float32)
    shift = (params["beta"] - mean * inv).reshape(C, 1).astype(jnp.float32)

    Fq = params["wq"].shape[1]
    Fv = params["wv"].shape[1]
    Co = params["wo"].shape[1]
    assert Co == C, "residual add requires output_filters == in_channels"

    # Fold the 1/sqrt(F) attention scale into the (tiny) Q weight/bias once.
    qk_scale = float(Fq) ** -0.5
    wq = (params["wq"] * qk_scale).astype(jnp.float32)          # (C, Fq)
    bq = (params["bq"] * qk_scale).reshape(Fq, 1).astype(jnp.float32)
    wk = params["wk"].astype(jnp.float32)                       # (C, Fq)
    bk = params["bk"].reshape(Fq, 1).astype(jnp.float32)
    wv = params["wv"].astype(jnp.float32)                       # (C, Fv)
    bv = params["bv"].reshape(Fv, 1).astype(jnp.float32)
    wo = params["wo"].astype(jnp.float32)                       # (Fv, C)
    bo = params["bo"].reshape(C, 1).astype(jnp.float32)

    def kernel(x_ref, scale_ref, shift_ref, wq_ref, bq_ref, wk_ref, bk_ref,
               wv_ref, bv_ref, wo_ref, bo_ref, out_ref, k_sc, v_sc):
        qi = pl.program_id(1)

        # K / V projected once per batch into persistent bf16 VMEM scratch
        # (Fq, N) / (Fv, N): lane-dense, spatial axis on lanes.
        @pl.when(qi == 0)
        def _project_kv():
            xall = x_ref[0].astype(jnp.float32)                 # (C, N)
            yall = jnp.clip(xall * scale_ref[...] + shift_ref[...], 0.0, 6.0)
            yb = yall.astype(jnp.bfloat16)
            k_sc[...] = (lax.dot_general(
                wk_ref[...].astype(jnp.bfloat16), yb, (((0,), (0,)), ((), ())),
                preferred_element_type=jnp.float32) + bk_ref[...]
            ).astype(jnp.bfloat16)
            v_sc[...] = (lax.dot_general(
                wv_ref[...].astype(jnp.bfloat16), yb, (((0,), (0,)), ((), ())),
                preferred_element_type=jnp.float32) + bv_ref[...]
            ).astype(jnp.bfloat16)

        # BN + ReLU6 on the query tile, then the (pre-scaled) Q projection.
        q_start = pl.multiple_of(qi * tq, 128)
        xq = x_ref[0, :, pl.ds(q_start, tq)].astype(jnp.float32)     # (C, tq)
        yq = jnp.clip(xq * scale_ref[...] + shift_ref[...], 0.0, 6.0)
        q = lax.dot_general(                                          # (Fq, tq)
            wq_ref[...].astype(jnp.bfloat16), yq.astype(jnp.bfloat16),
            (((0,), (0,)), ((), ())),
            preferred_element_type=jnp.float32) + bq_ref[...]
        qb = q.astype(jnp.bfloat16)

        # flash-style online softmax over kv chunks of the resident K/V scratch
        def kv_step(ck, carry):
            m, l, acc = carry
            off = pl.multiple_of(ck * tk, 128)
            k = k_sc[:, pl.ds(off, tk)]                               # (Fq, tk)
            v = v_sc[:, pl.ds(off, tk)]                               # (Fv, tk)
            s = lax.dot_general(k, qb, (((0,), (0,)), ((), ())),      # (tk, tq)
                                preferred_element_type=jnp.float32)
            m_new = jnp.maximum(m, jnp.max(s, axis=0, keepdims=True))
            alpha = jnp.exp(m - m_new)
            p = jnp.exp(s - m_new)                                    # (tk, tq)
            l_new = alpha * l + jnp.sum(p, axis=0, keepdims=True)
            pv = lax.dot_general(v, p.astype(jnp.bfloat16),           # (Fv, tq)
                                 (((1,), (0,)), ((), ())),
                                 preferred_element_type=jnp.float32)
            acc_new = alpha * acc + pv
            return m_new, l_new, acc_new

        m0 = jnp.full((1, tq), -jnp.inf, jnp.float32)
        l0 = jnp.zeros((1, tq), jnp.float32)
        acc0 = jnp.zeros((Fv, tq), jnp.float32)
        m, l, acc = lax.fori_loop(0, num_kv, kv_step, (m0, l0, acc0),
                                  unroll=(num_kv <= 8))

        # softmax denominator via the (otherwise idle) EUP reciprocal
        att = acc * pl.reciprocal(l, approx=True)                     # (Fv, tq)
        # output 1x1x1 conv -> (C, tq), lane-dense; residual adds raw x.
        out = lax.dot_general(
            wo_ref[...].astype(jnp.bfloat16), att.astype(jnp.bfloat16),
            (((0,), (0,)), ((), ())),
            preferred_element_type=jnp.float32) + bo_ref[...]
        out_ref[0] = (out + xq).astype(out_ref.dtype)

    # VMEM budget: actual need + headroom, clamped to 32-48 MiB (safe on the
    # 64 MiB v7x VMEM and trivially inside 128 MiB on v5e/v6e).
    isz = x.dtype.itemsize
    vmem_need = (2 * C * N * isz            # resident x row, double-buffered
                 + 2 * C * tq * isz         # output tile, double-buffered
                 + (Fq + Fv) * N * 2        # bf16 K/V scratch
                 + 6 * tk * tq * 4          # score / p temporaries
                 + (1 << 20))               # weights, biases, misc
    vmem_limit = int(min(max(2 * vmem_need, 32 * 1024 * 1024),
                         48 * 1024 * 1024))

    def rep_spec(shape):
        return pl.BlockSpec(shape, lambda b, qi, _s=shape: (0,) * len(_s))

    out = pl.pallas_call(
        kernel,
        out_shape=jax.ShapeDtypeStruct((B, C, N), x.dtype),
        grid_spec=pltpu.PrefetchScalarGridSpec(
            num_scalar_prefetch=0,
            grid=(B, num_q),
            in_specs=[
                pl.BlockSpec((1, C, N), lambda b, qi: (b, 0, 0)),   # x row (resident)
                rep_spec((C, 1)), rep_spec((C, 1)),                 # BN scale/shift
                rep_spec((C, Fq)), rep_spec((Fq, 1)),               # Wq, bq (pre-scaled)
                rep_spec((C, Fq)), rep_spec((Fq, 1)),               # Wk, bk
                rep_spec((C, Fv)), rep_spec((Fv, 1)),               # Wv, bv
                rep_spec((Fv, C)), rep_spec((C, 1)),                # Wo, bo
            ],
            out_specs=pl.BlockSpec((1, C, tq), lambda b, qi: (b, 0, qi)),
            scratch_shapes=[
                pltpu.VMEM((Fq, N), jnp.bfloat16),   # K cache (per batch)
                pltpu.VMEM((Fv, N), jnp.bfloat16),   # V cache (per batch)
            ]),
        compiler_params=pltpu.CompilerParams(
            # batch tiles independent (v7x 2-TC sharding); query axis must be
            # "arbitrary" because the per-batch K/V cache lives in scratch.
            dimension_semantics=("parallel", "arbitrary"),
            vmem_limit_bytes=vmem_limit,
        ),
    )(x, scale, shift, wq, bq, wk, bk, wv, bv, wo, bo)

    return out.reshape(B, C, D, H, W)


def reference_forward(x_ncdhw, params, eps=1e-5):
    """Pure-JAX f32 reference mirroring the PyTorch forward (training-mode BN, eval dropout)."""
    B, C, D, H, W = x_ncdhw.shape
    mean = jnp.mean(x_ncdhw, axis=(0, 2, 3, 4), keepdims=True)
    var = jnp.mean((x_ncdhw - mean) ** 2, axis=(0, 2, 3, 4), keepdims=True)
    g = params["gamma"][None, :, None, None, None]
    b = params["beta"][None, :, None, None, None]
    y = jnp.clip((x_ncdhw - mean) / jnp.sqrt(var + eps) * g + b, 0.0, 6.0)

    N = D * H * W
    yf = y.transpose(0, 2, 3, 4, 1).reshape(B, N, C)
    q = yf @ params["wq"] + params["bq"]
    k = yf @ params["wk"] + params["bk"]
    v = yf @ params["wv"] + params["bv"]
    Ck = params["wq"].shape[1]
    q = q * (float(Ck) ** -0.5)
    p = jax.nn.softmax(jnp.einsum("bnc,bmc->bnm", q, k), axis=-1)
    att = jnp.einsum("bnm,bmc->bnc", p, v)
    out = att @ params["wo"] + params["bo"]
    out = out.reshape(B, D, H, W, C).transpose(0, 4, 1, 2, 3)
    return out + x_ncdhw


def make_params(key, in_channels, filters):
    ks = jax.random.split(key, 10)
    C, F = in_channels, filters
    def lin(k, fan_in, shape):
        return jax.random.normal(k, shape, jnp.float32) / jnp.sqrt(fan_in)
    return {
        "gamma": jax.random.uniform(ks[0], (C,), jnp.float32, 0.5, 1.5),
        "beta": 0.1 * jax.random.normal(ks[1], (C,), jnp.float32),
        "wq": lin(ks[2], C, (C, F)), "bq": 0.01 * jax.random.normal(ks[3], (1, F), jnp.float32),
        "wk": lin(ks[4], C, (C, F)), "bk": 0.01 * jax.random.normal(ks[5], (1, F), jnp.float32),
        "wv": lin(ks[6], C, (C, F)), "bv": 0.01 * jax.random.normal(ks[7], (1, F), jnp.float32),
        "wo": lin(ks[8], F, (F, C)), "bo": 0.01 * jax.random.normal(ks[9], (1, C), jnp.float32),
    }


if __name__ == "__main__":
    key = jax.random.PRNGKey(0)
    kx, kp = jax.random.split(key)

    B, C, D, H, W = 2, 8, 8, 8, 8          # in_channels == filters == 8, strides == 1
    x = jax.random.normal(kx, (B, C, D, H, W), jnp.float32)
    params = make_params(kp, in_channels=C, filters=C)

    ref = jax.block_until_ready(reference_forward(x, params))

    # 1) multi-tile config: exercises the per-batch K/V cache, query tiling and
    #    the online-softmax kv loop (N=512 -> 2 query tiles x 4 kv chunks).
    out_tiled = jax.block_until_ready(
        attention_block_forward(x, params, tile_q=256, tile_k=128))
    # 2) default (large-tile) config: single tile per batch.
    out_full = jax.block_until_ready(attention_block_forward(x, params))

    assert out_tiled.shape == x.shape and out_full.shape == x.shape
    # Tolerance accommodates bf16 MXU feeds + approximate EUP reciprocal;
    # real bugs produce O(0.1+) errors.
    tol = 6e-2
    assert jnp.allclose(out_tiled, ref, atol=tol, rtol=tol), (
        float(jnp.max(jnp.abs(out_tiled - ref))))
    assert jnp.allclose(out_full, ref, atol=tol, rtol=tol), (
        float(jnp.max(jnp.abs(out_full - ref))))
    print("KERNEL_OK")
</pallas_src>

<mosaic_0001>
module attributes {stable_mosaic.version = 11 : i64} {
  func.func @kernel(%arg0: i32, %arg1: i32, %arg2: memref<1x8x512xf32, #tpu.memory_space<vmem>>, %arg3: memref<8x1xf32, #tpu.memory_space<vmem>>, %arg4: memref<8x1xf32, #tpu.memory_space<vmem>>, %arg5: memref<8x8xf32, #tpu.memory_space<vmem>>, %arg6: memref<8x1xf32, #tpu.memory_space<vmem>>, %arg7: memref<8x8xf32, #tpu.memory_space<vmem>>, %arg8: memref<8x1xf32, #tpu.memory_space<vmem>>, %arg9: memref<8x8xf32, #tpu.memory_space<vmem>>, %arg10: memref<8x1xf32, #tpu.memory_space<vmem>>, %arg11: memref<8x8xf32, #tpu.memory_space<vmem>>, %arg12: memref<8x1xf32, #tpu.memory_space<vmem>>, %arg13: memref<1x8x256xf32, #tpu.memory_space<vmem>>, %arg14: memref<8x512xbf16, #tpu.memory_space<vmem>>, %arg15: memref<8x512xbf16, #tpu.memory_space<vmem>>) attributes {dimension_semantics = [#tpu.dimension_semantics<parallel>, #tpu.dimension_semantics<arbitrary>], iteration_bounds = array<i64: 2, 2>, scalar_prefetch = 0 : i64, scratch_operands = 2 : i64, tpu.core_type = #tpu.core_type<tc>, window_params = [{transform_indices = @transform_0, window_bounds = array<i64: 1, 8, 512>}, {pipeline_mode = #tpu.pipeline_mode<synchronous>, transform_indices = @transform_1, window_bounds = array<i64: 8, 1>}, {pipeline_mode = #tpu.pipeline_mode<synchronous>, transform_indices = @transform_2, window_bounds = array<i64: 8, 1>}, {pipeline_mode = #tpu.pipeline_mode<synchronous>, transform_indices = @transform_3, window_bounds = array<i64: 8, 8>}, {pipeline_mode = #tpu.pipeline_mode<synchronous>, transform_indices = @transform_4, window_bounds = array<i64: 8, 1>}, {pipeline_mode = #tpu.pipeline_mode<synchronous>, transform_indices = @transform_5, window_bounds = array<i64: 8, 8>}, {pipeline_mode = #tpu.pipeline_mode<synchronous>, transform_indices = @transform_6, window_bounds = array<i64: 8, 1>}, {pipeline_mode = #tpu.pipeline_mode<synchronous>, transform_indices = @transform_7, window_bounds = array<i64: 8, 8>}, {pipeline_mode = #tpu.pipeline_mode<synchronous>, transform_indices = @transform_8, window_bounds = array<i64: 8, 1>}, {pipeline_mode = #tpu.pipeline_mode<synchronous>, transform_indices = @transform_9, window_bounds = array<i64: 8, 8>}, {pipeline_mode = #tpu.pipeline_mode<synchronous>, transform_indices = @transform_10, window_bounds = array<i64: 8, 1>}, {transform_indices = @transform_11, window_bounds = array<i64: 1, 8, 256>}]} {
    %c0_i32 = arith.constant 0 : i32
    %0 = arith.cmpi eq, %arg1, %c0_i32 : i32
    %1 = arith.extui %0 : i1 to i32
    %c0_i32_0 = arith.constant 0 : i32
    %2 = arith.cmpi ne, %1, %c0_i32_0 : i32
    scf.if %2 {
      %c0_51 = arith.constant 0 : index
      %c0_52 = arith.constant 0 : index
      %c0_53 = arith.constant 0 : index
      %139 = vector.load %arg2[%c0_51, %c0_52, %c0_53] : memref<1x8x512xf32, #tpu.memory_space<vmem>>, vector<1x8x512xf32>
      %140 = vector.shape_cast %139 : vector<1x8x512xf32> to vector<8x512xf32>
      %c0_54 = arith.constant 0 : index
      %c0_55 = arith.constant 0 : index
      %141 = vector.load %arg3[%c0_54, %c0_55] : memref<8x1xf32, #tpu.memory_space<vmem>>, vector<8x1xf32>
      %142 = vector.broadcast %141 : vector<8x1xf32> to vector<8x512xf32>
      %143 = arith.mulf %140, %142 : vector<8x512xf32>
      %c0_56 = arith.constant 0 : index
      %c0_57 = arith.constant 0 : index
      %144 = vector.load %arg4[%c0_56, %c0_57] : memref<8x1xf32, #tpu.memory_space<vmem>>, vector<8x1xf32>
      %145 = vector.broadcast %144 : vector<8x1xf32> to vector<8x512xf32>
      %146 = arith.addf %143, %145 : vector<8x512xf32>
      %cst_58 = arith.constant 0.000000e+00 : f32
      %cst_59 = arith.constant 6.000000e+00 : f32
      %147 = vector.broadcast %cst_58 : f32 to vector<8x512xf32>
      %148 = arith.maximumf %147, %146 : vector<8x512xf32>
      %149 = vector.broadcast %cst_59 : f32 to vector<8x512xf32>
      %150 = arith.minimumf %149, %148 : vector<8x512xf32>
      %151 = arith.truncf %150 : vector<8x512xf32> to vector<8x512xbf16>
      %c0_60 = arith.constant 0 : index
      %c0_61 = arith.constant 0 : index
      %152 = vector.load %arg7[%c0_60, %c0_61] : memref<8x8xf32, #tpu.memory_space<vmem>>, vector<8x8xf32>
      %153 = arith.truncf %152 : vector<8x8xf32> to vector<8x8xbf16>
      %cst_62 = arith.constant dense<0.000000e+00> : vector<8x512xf32>
      %154 = tpu.matmul %153, %151, %cst_62 {dimension_numbers = #tpu.dot_dimension_numbers<[0], [0], [1], [1], [0, 1, 1, 1], [], []>} : vector<8x8xbf16>, vector<8x512xbf16>, vector<8x512xf32> -> vector<8x512xf32>
      %c0_63 = arith.constant 0 : index
      %c0_64 = arith.constant 0 : index
      %155 = vector.load %arg8[%c0_63, %c0_64] : memref<8x1xf32, #tpu.memory_space<vmem>>, vector<8x1xf32>
      %156 = vector.broadcast %155 : vector<8x1xf32> to vector<8x512xf32>
      %157 = arith.addf %154, %156 : vector<8x512xf32>
      %158 = arith.truncf %157 : vector<8x512xf32> to vector<8x512xbf16>
      %c0_65 = arith.constant 0 : index
      %c0_66 = arith.constant 0 : index
      %159 = vector.load %arg14[%c0_65, %c0_66] : memref<8x512xbf16, #tpu.memory_space<vmem>>, vector<8x512xbf16>
      tpu.vector_store %arg14[%c0_65, %c0_66], %158 {strides = array<i32>} : memref<8x512xbf16, #tpu.memory_space<vmem>>, vector<8x512xbf16>,
      %c0_67 = arith.constant 0 : index
      %c0_68 = arith.constant 0 : index
      %160 = vector.load %arg9[%c0_67, %c0_68] : memref<8x8xf32, #tpu.memory_space<vmem>>, vector<8x8xf32>
      %161 = arith.truncf %160 : vector<8x8xf32> to vector<8x8xbf16>
      %cst_69 = arith.constant dense<0.000000e+00> : vector<8x512xf32>
      %162 = tpu.matmul %161, %151, %cst_69 {dimension_numbers = #tpu.dot_dimension_numbers<[0], [0], [1], [1], [0, 1, 1, 1], [], []>} : vector<8x8xbf16>, vector<8x512xbf16>, vector<8x512xf32> -> vector<8x512xf32>
      %c0_70 = arith.constant 0 : index
      %c0_71 = arith.constant 0 : index
      %163 = vector.load %arg10[%c0_70, %c0_71] : memref<8x1xf32, #tpu.memory_space<vmem>>, vector<8x1xf32>
      %164 = vector.broadcast %163 : vector<8x1xf32> to vector<8x512xf32>
      %165 = arith.addf %162, %164 : vector<8x512xf32>
      %166 = arith.truncf %165 : vector<8x512xf32> to vector<8x512xbf16>
      %c0_72 = arith.constant 0 : index
      %c0_73 = arith.constant 0 : index
      %167 = vector.load %arg15[%c0_72, %c0_73] : memref<8x512xbf16, #tpu.memory_space<vmem>>, vector<8x512xbf16>
      tpu.vector_store %arg15[%c0_72, %c0_73], %166 {strides = array<i32>} : memref<8x512xbf16, #tpu.memory_space<vmem>>, vector<8x512xbf16>,
    } else {
    }
    %c256_i32 = arith.constant 256 : i32
    %3 = arith.muli %arg1, %c256_i32 : i32
    %4 = tpu.assume_multiple %3, 128 : i32
    %c0 = arith.constant 0 : index
    %c0_1 = arith.constant 0 : index
    %5 = arith.index_cast %4 : i32 to index
    %6 = vector.load %arg2[%c0, %c0_1, %5] : memref<1x8x512xf32, #tpu.memory_space<vmem>>, vector<1x8x256xf32>
    %7 = vector.shape_cast %6 : vector<1x8x256xf32> to vector<8x256xf32>
    %c0_2 = arith.constant 0 : index
    %c0_3 = arith.constant 0 : index
    %8 = vector.load %arg3[%c0_2, %c0_3] : memref<8x1xf32, #tpu.memory_space<vmem>>, vector<8x1xf32>
    %9 = vector.broadcast %8 : vector<8x1xf32> to vector<8x256xf32>
    %10 = arith.mulf %7, %9 : vector<8x256xf32>
    %c0_4 = arith.constant 0 : index
    %c0_5 = arith.constant 0 : index
    %11 = vector.load %arg4[%c0_4, %c0_5] : memref<8x1xf32, #tpu.memory_space<vmem>>, vector<8x1xf32>
    %12 = vector.broadcast %11 : vector<8x1xf32> to vector<8x256xf32>
    %13 = arith.addf %10, %12 : vector<8x256xf32>
    %cst = arith.constant 0.000000e+00 : f32
    %cst_6 = arith.constant 6.000000e+00 : f32
    %14 = vector.broadcast %cst : f32 to vector<8x256xf32>
    %15 = arith.maximumf %14, %13 : vector<8x256xf32>
    %16 = vector.broadcast %cst_6 : f32 to vector<8x256xf32>
    %17 = arith.minimumf %16, %15 : vector<8x256xf32>
    %c0_7 = arith.constant 0 : index
    %c0_8 = arith.constant 0 : index
    %18 = vector.load %arg5[%c0_7, %c0_8] : memref<8x8xf32, #tpu.memory_space<vmem>>, vector<8x8xf32>
    %19 = arith.truncf %18 : vector<8x8xf32> to vector<8x8xbf16>
    %20 = arith.truncf %17 : vector<8x256xf32> to vector<8x256xbf16>
    %cst_9 = arith.constant dense<0.000000e+00> : vector<8x256xf32>
    %21 = tpu.matmul %19, %20, %cst_9 {dimension_numbers = #tpu.dot_dimension_numbers<[0], [0], [1], [1], [0, 1, 1, 1], [], []>} : vector<8x8xbf16>, vector<8x256xbf16>, vector<8x256xf32> -> vector<8x256xf32>
    %c0_10 = arith.constant 0 : index
    %c0_11 = arith.constant 0 : index
    %22 = vector.load %arg6[%c0_10, %c0_11] : memref<8x1xf32, #tpu.memory_space<vmem>>, vector<8x1xf32>
    %23 = vector.broadcast %22 : vector<8x1xf32> to vector<8x256xf32>
    %24 = arith.addf %21, %23 : vector<8x256xf32>
    %25 = arith.truncf %24 : vector<8x256xf32> to vector<8x256xbf16>
    %cst_12 = arith.constant 0xFF800000 : f32
    %26 = vector.broadcast %cst_12 : f32 to vector<1x256xf32>
    %cst_13 = arith.constant 0.000000e+00 : f32
    %27 = vector.broadcast %cst_13 : f32 to vector<1x256xf32>
    %cst_14 = arith.constant 0.000000e+00 : f32
    %28 = vector.broadcast %cst_14 : f32 to vector<8x256xf32>
    %c0_i32_15 = arith.constant 0 : i32
    %c128_i32 = arith.constant 128 : i32
    %29 = arith.muli %c0_i32_15, %c128_i32 : i32
    %30 = tpu.assume_multiple %29, 128 : i32
    %c0_16 = arith.constant 0 : index
    %31 = arith.index_cast %30 : i32 to index
    %32 = vector.load %arg14[%c0_16, %31] : memref<8x512xbf16, #tpu.memory_space<vmem>>, vector<8x128xbf16>
    %c0_17 = arith.constant 0 : index
    %33 = arith.index_cast %30 : i32 to index
    %34 = vector.load %arg15[%c0_17, %33] : memref<8x512xbf16, #tpu.memory_space<vmem>>, vector<8x128xbf16>
    %cst_18 = arith.constant dense<0.000000e+00> : vector<128x256xf32>
    %35 = tpu.matmul %32, %25, %cst_18 {dimension_numbers = #tpu.dot_dimension_numbers<[0], [0], [1], [1], [0, 1, 1, 1], [], []>} : vector<8x128xbf16>, vector<8x256xbf16>, vector<128x256xf32> -> vector<128x256xf32>
    %cst_19 = arith.constant dense<0xFF800000> : vector<256xf32>
    %36 = vector.multi_reduction <maximumf>, %35, %cst_19 [0] : vector<128x256xf32> to vector<256xf32>
    %37 = vector.shape_cast %36 : vector<256xf32> to vector<1x256xf32>
    %38 = arith.maximumf %26, %37 : vector<1x256xf32>
    %39 = arith.subf %26, %38 : vector<1x256xf32>
    %40 = math.exp %39 : vector<1x256xf32>
    %41 = vector.broadcast %38 : vector<1x256xf32> to vector<128x256xf32>
    %42 = arith.subf %35, %41 : vector<128x256xf32>
    %43 = math.exp %42 : vector<128x256xf32>
    %44 = arith.mulf %40, %27 : vector<1x256xf32>
    %cst_20 = arith.constant dense<0.000000e+00> : vector<256xf32>
    %45 = vector.multi_reduction <add>, %43, %cst_20 [0] : vector<128x256xf32> to vector<256xf32>
    %46 = vector.shape_cast %45 : vector<256xf32> to vector<1x256xf32>
    %47 = arith.addf %44, %46 : vector<1x256xf32>
    %48 = arith.truncf %43 : vector<128x256xf32> to vector<128x256xbf16>
    %cst_21 = arith.constant dense<0.000000e+00> : vector<8x256xf32>
    %49 = tpu.matmul %34, %48, %cst_21 {dimension_numbers = #tpu.dot_dimension_numbers<[1], [0], [0], [1], [0, 0, 1, 1], [], []>} : vector<8x128xbf16>, vector<128x256xbf16>, vector<8x256xf32> -> vector<8x256xf32>
    %50 = vector.broadcast %40 : vector<1x256xf32> to vector<8x256xf32>
    %51 = arith.mulf %50, %28 : vector<8x256xf32>
    %52 = arith.addf %51, %49 : vector<8x256xf32>
    %c1_i32 = arith.constant 1 : i32
    %c128_i32_22 = arith.constant 128 : i32
    %53 = arith.muli %c1_i32, %c128_i32_22 : i32
    %54 = tpu.assume_multiple %53, 128 : i32
    %c0_23 = arith.constant 0 : index
    %55 = arith.index_cast %54 : i32 to index
    %56 = vector.load %arg14[%c0_23, %55] : memref<8x512xbf16, #tpu.memory_space<vmem>>, vector<8x128xbf16>
    %c0_24 = arith.constant 0 : index
    %57 = arith.index_cast %54 : i32 to index
    %58 = vector.load %arg15[%c0_24, %57] : memref<8x512xbf16, #tpu.memory_space<vmem>>, vector<8x128xbf16>
    %cst_25 = arith.constant dense<0.000000e+00> : vector<128x256xf32>
    %59 = tpu.matmul %56, %25, %cst_25 {dimension_numbers = #tpu.dot_dimension_numbers<[0], [0], [1], [1], [0, 1, 1, 1], [], []>} : vector<8x128xbf16>, vector<8x256xbf16>, vector<128x256xf32> -> vector<128x256xf32>
    %cst_26 = arith.constant dense<0xFF800000> : vector<256xf32>
    %60 = vector.multi_reduction <maximumf>, %59, %cst_26 [0] : vector<128x256xf32> to vector<256xf32>
    %61 = vector.shape_cast %60 : vector<256xf32> to vector<1x256xf32>
    %62 = arith.maximumf %38, %61 : vector<1x256xf32>
    %63 = arith.subf %38, %62 : vector<1x256xf32>
    %64 = math.exp %63 : vector<1x256xf32>
    %65 = vector.broadcast %62 : vector<1x256xf32> to vector<128x256xf32>
    %66 = arith.subf %59, %65 : vector<128x256xf32>
    %67 = math.exp %66 : vector<128x256xf32>
    %68 = arith.mulf %64, %47 : vector<1x256xf32>
    %cst_27 = arith.constant dense<0.000000e+00> : vector<256xf32>
    %69 = vector.multi_reduction <add>, %67, %cst_27 [0] : vector<128x256xf32> to vector<256xf32>
    %70 = vector.shape_cast %69 : vector<256xf32> to vector<1x256xf32>
    %71 = arith.addf %68, %70 : vector<1x256xf32>
    %72 = arith.truncf %67 : vector<128x256xf32> to vector<128x256xbf16>
    %cst_28 = arith.constant dense<0.000000e+00> : vector<8x256xf32>
    %73 = tpu.matmul %58, %72, %cst_28 {dimension_numbers = #tpu.dot_dimension_numbers<[1], [0], [0], [1], [0, 0, 1, 1], [], []>} : vector<8x128xbf16>, vector<128x256xbf16>, vector<8x256xf32> -> vector<8x256xf32>
    %74 = vector.broadcast %64 : vector<1x256xf32> to vector<8x256xf32>
    %75 = arith.mulf %74, %52 : vector<8x256xf32>
    %76 = arith.addf %75, %73 : vector<8x256xf32>
    %c2_i32 = arith.constant 2 : i32
    %c128_i32_29 = arith.constant 128 : i32
    %77 = arith.muli %c2_i32, %c128_i32_29 : i32
    %78 = tpu.assume_multiple %77, 128 : i32
    %c0_30 = arith.constant 0 : index
    %79 = arith.index_cast %78 : i32 to index
    %80 = vector.load %arg14[%c0_30, %79] : memref<8x512xbf16, #tpu.memory_space<vmem>>, vector<8x128xbf16>
    %c0_31 = arith.constant 0 : index
    %81 = arith.index_cast %78 : i32 to index
    %82 = vector.load %arg15[%c0_31, %81] : memref<8x512xbf16, #tpu.memory_space<vmem>>, vector<8x128xbf16>
    %cst_32 = arith.constant dense<0.000000e+00> : vector<128x256xf32>
    %83 = tpu.matmul %80, %25, %cst_32 {dimension_numbers = #tpu.dot_dimension_numbers<[0], [0], [1], [1], [0, 1, 1, 1], [], []>} : vector<8x128xbf16>, vector<8x256xbf16>, vector<128x256xf32> -> vector<128x256xf32>
    %cst_33 = arith.constant dense<0xFF800000> : vector<256xf32>
    %84 = vector.multi_reduction <maximumf>, %83, %cst_33 [0] : vector<128x256xf32> to vector<256xf32>
    %85 = vector.shape_cast %84 : vector<256xf32> to vector<1x256xf32>
    %86 = arith.maximumf %62, %85 : vector<1x256xf32>
    %87 = arith.subf %62, %86 : vector<1x256xf32>
    %88 = math.exp %87 : vector<1x256xf32>
    %89 = vector.broadcast %86 : vector<1x256xf32> to vector<128x256xf32>
    %90 = arith.subf %83, %89 : vector<128x256xf32>
    %91 = math.exp %90 : vector<128x256xf32>
    %92 = arith.mulf %88, %71 : vector<1x256xf32>
    %cst_34 = arith.constant dense<0.000000e+00> : vector<256xf32>
    %93 = vector.multi_reduction <add>, %91, %cst_34 [0] : vector<128x256xf32> to vector<256xf32>
    %94 = vector.shape_cast %93 : vector<256xf32> to vector<1x256xf32>
    %95 = arith.addf %92, %94 : vector<1x256xf32>
    %96 = arith.truncf %91 : vector<128x256xf32> to vector<128x256xbf16>
    %cst_35 = arith.constant dense<0.000000e+00> : vector<8x256xf32>
    %97 = tpu.matmul %82, %96, %cst_35 {dimension_numbers = #tpu.dot_dimension_numbers<[1], [0], [0], [1], [0, 0, 1, 1], [], []>} : vector<8x128xbf16>, vector<128x256xbf16>, vector<8x256xf32> -> vector<8x256xf32>
    %98 = vector.broadcast %88 : vector<1x256xf32> to vector<8x256xf32>
    %99 = arith.mulf %98, %76 : vector<8x256xf32>
    %100 = arith.addf %99, %97 : vector<8x256xf32>
    %c3_i32 = arith.constant 3 : i32
    %c128_i32_36 = arith.constant 128 : i32
    %101 = arith.muli %c3_i32, %c128_i32_36 : i32
    %102 = tpu.assume_multiple %101, 128 : i32
    %c0_37 = arith.constant 0 : index
    %103 = arith.index_cast %102 : i32 to index
    %104 = vector.load %arg14[%c0_37, %103] : memref<8x512xbf16, #tpu.memory_space<vmem>>, vector<8x128xbf16>
    %c0_38 = arith.constant 0 : index
    %105 = arith.index_cast %102 : i32 to index
    %106 = vector.load %arg15[%c0_38, %105] : memref<8x512xbf16, #tpu.memory_space<vmem>>, vector<8x128xbf16>
    %cst_39 = arith.constant dense<0.000000e+00> : vector<128x256xf32>
    %107 = tpu.matmul %104, %25, %cst_39 {dimension_numbers = #tpu.dot_dimension_numbers<[0], [0], [1], [1], [0, 1, 1, 1], [], []>} : vector<8x128xbf16>, vector<8x256xbf16>, vector<128x256xf32> -> vector<128x256xf32>
    %cst_40 = arith.constant dense<0xFF800000> : vector<256xf32>
    %108 = vector.multi_reduction <maximumf>, %107, %cst_40 [0] : vector<128x256xf32> to vector<256xf32>
    %109 = vector.shape_cast %108 : vector<256xf32> to vector<1x256xf32>
    %110 = arith.maximumf %86, %109 : vector<1x256xf32>
    %111 = arith.subf %86, %110 : vector<1x256xf32>
    %112 = math.exp %111 : vector<1x256xf32>
    %113 = vector.broadcast %110 : vector<1x256xf32> to vector<128x256xf32>
    %114 = arith.subf %107, %113 : vector<128x256xf32>
    %115 = math.exp %114 : vector<128x256xf32>
    %116 = arith.mulf %112, %95 : vector<1x256xf32>
    %cst_41 = arith.constant dense<0.000000e+00> : vector<256xf32>
    %117 = vector.multi_reduction <add>, %115, %cst_41 [0] : vector<128x256xf32> to vector<256xf32>
    %118 = vector.shape_cast %117 : vector<256xf32> to vector<1x256xf32>
    %119 = arith.addf %116, %118 : vector<1x256xf32>
    %120 = arith.truncf %115 : vector<128x256xf32> to vector<128x256xbf16>
    %cst_42 = arith.constant dense<0.000000e+00> : vector<8x256xf32>
    %121 = tpu.matmul %106, %120, %cst_42 {dimension_numbers = #tpu.dot_dimension_numbers<[1], [0], [0], [1], [0, 0, 1, 1], [], []>} : vector<8x128xbf16>, vector<128x256xbf16>, vector<8x256xf32> -> vector<8x256xf32>
    %122 = vector.broadcast %112 : vector<1x256xf32> to vector<8x256xf32>
    %123 = arith.mulf %122, %100 : vector<8x256xf32>
    %124 = arith.addf %123, %121 : vector<8x256xf32>
    %c4_i32 = arith.constant 4 : i32
    %125 = tpu.reciprocal %119 {approx = true} : vector<1x256xf32> -> vector<1x256xf32>
    %126 = vector.broadcast %125 : vector<1x256xf32> to vector<8x256xf32>
    %127 = arith.mulf %124, %126 : vector<8x256xf32>
    %c0_43 = arith.constant 0 : index
    %c0_44 = arith.constant 0 : index
    %128 = vector.load %arg11[%c0_43, %c0_44] : memref<8x8xf32, #tpu.memory_space<vmem>>, vector<8x8xf32>
    %129 = arith.truncf %128 : vector<8x8xf32> to vector<8x8xbf16>
    %130 = arith.truncf %127 : vector<8x256xf32> to vector<8x256xbf16>
    %cst_45 = arith.constant dense<0.000000e+00> : vector<8x256xf32>
    %131 = tpu.matmul %129, %130, %cst_45 {dimension_numbers = #tpu.dot_dimension_numbers<[0], [0], [1], [1], [0, 1, 1, 1], [], []>} : vector<8x8xbf16>, vector<8x256xbf16>, vector<8x256xf32> -> vector<8x256xf32>
    %c0_46 = arith.constant 0 : index
    %c0_47 = arith.constant 0 : index
    %132 = vector.load %arg12[%c0_46, %c0_47] : memref<8x1xf32, #tpu.memory_space<vmem>>, vector<8x1xf32>
    %133 = vector.broadcast %132 : vector<8x1xf32> to vector<8x256xf32>
    %134 = arith.addf %131, %133 : vector<8x256xf32>
    %135 = arith.addf %134, %7 : vector<8x256xf32>
    %c0_48 = arith.constant 0 : index
    %c0_49 = arith.constant 0 : index
    %c0_50 = arith.constant 0 : index
    %136 = vector.load %arg13[%c0_48, %c0_49, %c0_50] : memref<1x8x256xf32, #tpu.memory_space<vmem>>, vector<1x8x256xf32>
    %137 = vector.shape_cast %136 : vector<1x8x256xf32> to vector<8x256xf32>
    %138 = vector.shape_cast %135 : vector<8x256xf32> to vector<1x8x256xf32>
    tpu.vector_store %arg13[%c0_48, %c0_49, %c0_50], %138 {strides = array<i32>} : memref<1x8x256xf32, #tpu.memory_space<vmem>>, vector<1x8x256xf32>,
    return
  }
  func.func @transform_0(%arg0: i32, %arg1: i32) -> (i32, i32, i32) {
    %c0_i32 = arith.constant 0 : i32
    %c0_i32_0 = arith.constant 0 : i32
    %c0_i32_1 = arith.constant 0 : i32
    return %arg0, %c0_i32, %c0_i32_0 : i32, i32, i32
  }
  func.func @transform_1(%arg0: i32, %arg1: i32) -> (i32, i32) {
    %c0_i32 = arith.constant 0 : i32
    %c0_i32_0 = arith.constant 0 : i32
    %c0_i32_1 = arith.constant 0 : i32
    return %c0_i32, %c0_i32_0 : i32, i32
  }
  func.func @transform_2(%arg0: i32, %arg1: i32) -> (i32, i32) {
    %c0_i32 = arith.constant 0 : i32
    %c0_i32_0 = arith.constant 0 : i32
    %c0_i32_1 = arith.constant 0 : i32
    return %c0_i32, %c0_i32_0 : i32, i32
  }
  func.func @transform_3(%arg0: i32, %arg1: i32) -> (i32, i32) {
    %c0_i32 = arith.constant 0 : i32
    %c0_i32_0 = arith.constant 0 : i32
    %c0_i32_1 = arith.constant 0 : i32
    return %c0_i32, %c0_i32_0 : i32, i32
  }
  func.func @transform_4(%arg0: i32, %arg1: i32) -> (i32, i32) {
    %c0_i32 = arith.constant 0 : i32
    %c0_i32_0 = arith.constant 0 : i32
    %c0_i32_1 = arith.constant 0 : i32
    return %c0_i32, %c0_i32_0 : i32, i32
  }
  func.func @transform_5(%arg0: i32, %arg1: i32) -> (i32, i32) {
    %c0_i32 = arith.constant 0 : i32
    %c0_i32_0 = arith.constant 0 : i32
    %c0_i32_1 = arith.constant 0 : i32
    return %c0_i32, %c0_i32_0 : i32, i32
  }
  func.func @transform_6(%arg0: i32, %arg1: i32) -> (i32, i32) {
    %c0_i32 = arith.constant 0 : i32
    %c0_i32_0 = arith.constant 0 : i32
    %c0_i32_1 = arith.constant 0 : i32
    return %c0_i32, %c0_i32_0 : i32, i32
  }
  func.func @transform_7(%arg0: i32, %arg1: i32) -> (i32, i32) {
    %c0_i32 = arith.constant 0 : i32
    %c0_i32_0 = arith.constant 0 : i32
    %c0_i32_1 = arith.constant 0 : i32
    return %c0_i32, %c0_i32_0 : i32, i32
  }
  func.func @transform_8(%arg0: i32, %arg1: i32) -> (i32, i32) {
    %c0_i32 = arith.constant 0 : i32
    %c0_i32_0 = arith.constant 0 : i32
    %c0_i32_1 = arith.constant 0 : i32
    return %c0_i32, %c0_i32_0 : i32, i32
  }
  func.func @transform_9(%arg0: i32, %arg1: i32) -> (i32, i32) {
    %c0_i32 = arith.constant 0 : i32
    %c0_i32_0 = arith.constant 0 : i32
    %c0_i32_1 = arith.constant 0 : i32
    return %c0_i32, %c0_i32_0 : i32, i32
  }
  func.func @transform_10(%arg0: i32, %arg1: i32) -> (i32, i32) {
    %c0_i32 = arith.constant 0 : i32
    %c0_i32_0 = arith.constant 0 : i32
    %c0_i32_1 = arith.constant 0 : i32
    return %c0_i32, %c0_i32_0 : i32, i32
  }
  func.func @transform_11(%arg0: i32, %arg1: i32) -> (i32, i32, i32) {
    %c0_i32 = arith.constant 0 : i32
    %c0_i32_0 = arith.constant 0 : i32
    return %arg0, %c0_i32, %arg1 : i32, i32, i32
  }
}

</mosaic_0001>

<llo_original>
// kernel: tpu_custom_call.1
$region0: #{tpu_custom_call.1}
  #allocation0 [shape = 'u32[]', space=smem, size = 0x4, offset = 0x4, fixed_abs, tag = 'smem constant byte address 0x4 - core index']
  #allocation1 [shape = 'u32[144,128]{1,0:T(1,128)}', space=vmem, size = 0x12000, scoped, tag = 'internal scratch']
  #allocation2 [shape = 'bf16[8,512]{1,0:T(8,128)(2,1)}', space=vmem, size = 0x2000, scoped, tag = 'scratch operand']
  #allocation3 [shape = 'bf16[8,512]{1,0:T(8,128)(2,1)}', space=vmem, size = 0x2000, scoped, tag = 'scratch operand']
  %s0 = inlined_call_operand.hbm [shape: f32[2,8,512], index: 0, kind: input, shape index: {}]
  %s1 = inlined_call_operand.vmem [shape: f32[8,1], index: 1, kind: input, shape index: {}]
  %s2 = inlined_call_operand.vmem [shape: f32[8,1], index: 2, kind: input, shape index: {}]
  %s3 = inlined_call_operand.vmem [shape: f32[8,8], index: 3, kind: input, shape index: {}]
  %s4 = inlined_call_operand.vmem [shape: f32[8,1], index: 4, kind: input, shape index: {}]
  %s5 = inlined_call_operand.vmem [shape: f32[8,8], index: 5, kind: input, shape index: {}]
  %s6 = inlined_call_operand.vmem [shape: f32[8,1], index: 6, kind: input, shape index: {}]
  %s7 = inlined_call_operand.vmem [shape: f32[8,8], index: 7, kind: input, shape index: {}]
  %s8 = inlined_call_operand.vmem [shape: f32[8,1], index: 8, kind: input, shape index: {}]
  %s9 = inlined_call_operand.vmem [shape: f32[8,8], index: 9, kind: input, shape index: {}]
  %s10 = inlined_call_operand.vmem [shape: f32[8,1], index: 10, kind: input, shape index: {}]
  %s11 = inlined_call_operand.hbm [shape: f32[2,8,512], index: 11, kind: output, shape index: {}]
  %s12 = sld [smem:[#allocation0]]
  $region85: #{tpu_custom_call.1} parent=0
    _
  %s14 = ssub.s32 1, %s12
  %s15 = scalar_select 0, %s14, %s12
  $region1: #{tpu_custom_call.1} parent=0
    #allocation4 [shape = 'u8[32768]{0}', space=vmem, size = 0x8000, scoped, tag = 'input window, operand 0']
    #allocation5 [shape = 's32[2]{0}', space=sflag, size = 0x8, scoped, tag = 'scoped memory for tpu_custom_call.1']
    #allocation6 [shape = 's32[2]{0}', space=sflag, size = 0x8, scoped, tag = 'scoped memory for tpu_custom_call.1']
    #allocation7 [shape = 'u8[16384]{0}', space=vmem, size = 0x4000, scoped, tag = 'output window, operand 0']
    %16 = vsyncpa [#allocation5], 0
    %s17 = scalar_lea.sflag [#allocation5], 1
    %18 = vsyncpa %s17, 0
    %19 = vsyncpa [#allocation6], 0
    %s20 = scalar_lea.sflag [#allocation6], 1
    %21 = vsyncpa %s20, 0
    loop: start=0, step=1, limit=6
    $region2: #{tpu_custom_call.1} parent=1 // loop_pre_header
      _
    $region3: #{tpu_custom_call.1} parent=1 // loop_header
      %s23 = sphi 0, %s27
      %p24 = scmp.ge.s32.totalorder %s23, 6
      %s30 = sphi 0, %s42
      %s31 = sphi 0, %s38
      %s32 = sphi 0, %s30
      %s33 = sphi 0, %s31
      %s34 = sphi 0, %s32
      %s35 = sphi 0, %s33
      %s45 = sphi 0, %s47
      %s48 = sphi 0, %s45
      %s49 = sphi 0, %s48
      %s65 = sphi 0, %s49
      %s69 = sphi 0, %s69
      %s71 = sphi 0, %s69
      %s72 = sphi 0, %s71
      %s86 = sphi 0, %s72
      %s90 = sphi 0, %s90
      %s92 = sphi 0, %s90
      %s93 = sphi 0, %s92
      %s107 = sphi 0, %s93
      %s111 = sphi 0, %s111
      %s113 = sphi 0, %s111
      %s114 = sphi 0, %s113
      %s128 = sphi 0, %s114
      %s132 = sphi 0, %s132
      %s134 = sphi 0, %s132
      %s135 = sphi 0, %s134
      %s149 = sphi 0, %s135
      %s153 = sphi 0, %s153
      %s155 = sphi 0, %s153
      %s156 = sphi 0, %s155
      %s170 = sphi 0, %s156
      %s174 = sphi 0, %s174
      %s176 = sphi 0, %s174
      %s177 = sphi 0, %s176
      %s191 = sphi 0, %s177
      %s195 = sphi 0, %s195
      %s197 = sphi 0, %s195
      %s198 = sphi 0, %s197
      %s212 = sphi 0, %s198
      %s216 = sphi 0, %s216
      %s218 = sphi 0, %s216
      %s219 = sphi 0, %s218
      %s233 = sphi 0, %s219
      %s237 = sphi 0, %s237
      %s239 = sphi 0, %s237
      %s240 = sphi 0, %s239
      %s254 = sphi 0, %s240
      %s258 = sphi 0, %s258
      %s260 = sphi 0, %s258
      %s261 = sphi 0, %s260
      %s275 = sphi 0, %s261
      %s283 = sphi 0, %s285
      %s286 = sphi 0, %s283
      %s287 = sphi 0, %s286
      %s303 = sphi 0, %s287
    $region4: #{tpu_custom_call.1} parent=1 // loop_header_branch
      %26 = sbr.rel (%p24) target = $region8
    $region5: #{tpu_custom_call.1} parent=1 // loop_body
      %s28 = ssub.s32 %s23, 1
      %s29 = ssub.s32 %s23, 2
      %s36 = sadd.s32 1, %s31
      %p37 = scmp.ge.s32.totalorder %s36, 2
      %s38 = scalar_select %p37, 0, %s36
      %s39 = sadd.s32 1, %s30
      %s40 = scalar_select %p37, %s39, %s30
      %p41 = scmp.ge.s32.totalorder %s40, 2
      %s42 = scalar_select %p41, 0, %s40
      %s43 = ssub.s32 %s30, %s42
      %p44 = scmp.eq.s32.totalorder %s43, 0
      %s46 = sadd.s32 %s45, 1
      %s47 = scalar_select %p44, %s45, %s46
      %p50 = pneg %p44
      %p51 = scmp.eq.s32.totalorder %s23, 3
      %p52 = por %p50, %p51
      %p53 = scmp.ne.s32.totalorder %s45, %s48
      %p54 = scmp.eq.s32.totalorder %s23, 0
      %p55 = por %p53, %p54
      %p56 = scmp.ne.s32.totalorder %s45, %s48
      %p57 = scmp.eq.s32.totalorder %s28, 3
      %p58 = por %p56, %p57
      %p59 = scmp.ne.s32.totalorder %s48, %s49
      %p60 = scmp.eq.s32.totalorder %s28, 0
      %p61 = por %p59, %p60
      %p62 = scmp.ne.s32.totalorder %s48, %s49
      %p63 = scmp.eq.s32.totalorder %s29, 3
      %p64 = por %p62, %p63
      %p66 = scmp.ne.s32.totalorder %s49, %s65
      %p67 = scmp.eq.s32.totalorder %s29, 0
      %p68 = por %p66, %p67
      %s70 = sadd.s32 %s69, 1
      %p73 = scmp.eq.s32.totalorder %s23, 3
      %p74 = scmp.ne.s32.totalorder %s69, %s71
      %p75 = scmp.eq.s32.totalorder %s23, 0
      %p76 = por %p74, %p75
      %p77 = scmp.ne.s32.totalorder %s69, %s71
      %p78 = scmp.eq.s32.totalorder %s28, 3
      %p79 = por %p77, %p78
      %p80 = scmp.ne.s32.totalorder %s71, %s72
      %p81 = scmp.eq.s32.totalorder %s28, 0
      %p82 = por %p80, %p81
      %p83 = scmp.ne.s32.totalorder %s71, %s72
      %p84 = scmp.eq.s32.totalorder %s29, 3
      %p85 = por %p83, %p84
      %p87 = scmp.ne.s32.totalorder %s72, %s86
      %p88 = scmp.eq.s32.totalorder %s29, 0
      %p89 = por %p87, %p88
      %s91 = sadd.s32 %s90, 1
      %p94 = scmp.eq.s32.totalorder %s23, 3
      %p95 = scmp.ne.s32.totalorder %s90, %s92
      %p96 = scmp.eq.s32.totalorder %s23, 0
      %p97 = por %p95, %p96
      %p98 = scmp.ne.s32.totalorder %s90, %s92
      %p99 = scmp.eq.s32.totalorder %s28, 3
      %p100 = por %p98, %p99
      %p101 = scmp.ne.s32.totalorder %s92, %s93
      %p102 = scmp.eq.s32.totalorder %s28, 0
      %p103 = por %p101, %p102
      %p104 = scmp.ne.s32.totalorder %s92, %s93
      %p105 = scmp.eq.s32.totalorder %s29, 3
      %p106 = por %p104, %p105
      %p108 = scmp.ne.s32.totalorder %s93, %s107
      %p109 = scmp.eq.s32.totalorder %s29, 0
      %p110 = por %p108, %p109
      %s112 = sadd.s32 %s111, 1
      %p115 = scmp.eq.s32.totalorder %s23, 3
      %p116 = scmp.ne.s32.totalorder %s111, %s113
      %p117 = scmp.eq.s32.totalorder %s23, 0
      %p118 = por %p116, %p117
      %p119 = scmp.ne.s32.totalorder %s111, %s113
      %p120 = scmp.eq.s32.totalorder %s28, 3
      %p121 = por %p119, %p120
      %p122 = scmp.ne.s32.totalorder %s113, %s114
      %p123 = scmp.eq.s32.totalorder %s28, 0
      %p124 = por %p122, %p123
      %p125 = scmp.ne.s32.totalorder %s113, %s114
      %p126 = scmp.eq.s32.totalorder %s29, 3
      %p127 = por %p125, %p126
      %p129 = scmp.ne.s32.totalorder %s114, %s128
      %p130 = scmp.eq.s32.totalorder %s29, 0
      %p131 = por %p129, %p130
      %s133 = sadd.s32 %s132, 1
      %p136 = scmp.eq.s32.totalorder %s23, 3
      %p137 = scmp.ne.s32.totalorder %s132, %s134
      %p138 = scmp.eq.s32.totalorder %s23, 0
      %p139 = por %p137, %p138
      %p140 = scmp.ne.s32.totalorder %s132, %s134
      %p141 = scmp.eq.s32.totalorder %s28, 3
      %p142 = por %p140, %p141
      %p143 = scmp.ne.s32.totalorder %s134, %s135
      %p144 = scmp.eq.s32.totalorder %s28, 0
      %p145 = por %p143, %p144
      %p146 = scmp.ne.s32.totalorder %s134, %s135
      %p147 = scmp.eq.s32.totalorder %s29, 3
      %p148 = por %p146, %p147
      %p150 = scmp.ne.s32.totalorder %s135, %s149
      %p151 = scmp.eq.s32.totalorder %s29, 0
      %p152 = por %p150, %p151
      %s154 = sadd.s32 %s153, 1
      %p157 = scmp.eq.s32.totalorder %s23, 3
      %p158 = scmp.ne.s32.totalorder %s153, %s155
      %p159 = scmp.eq.s32.totalorder %s23, 0
      %p160 = por %p158, %p159
      %p161 = scmp.ne.s32.totalorder %s153, %s155
      %p162 = scmp.eq.s32.totalorder %s28, 3
      %p163 = por %p161, %p162
      %p164 = scmp.ne.s32.totalorder %s155, %s156
      %p165 = scmp.eq.s32.totalorder %s28, 0
      %p166 = por %p164, %p165
      %p167 = scmp.ne.s32.totalorder %s155, %s156
      %p168 = scmp.eq.s32.totalorder %s29, 3
      %p169 = por %p167, %p168
      %p171 = scmp.ne.s32.totalorder %s156, %s170
      %p172 = scmp.eq.s32.totalorder %s29, 0
      %p173 = por %p171, %p172
      %s175 = sadd.s32 %s174, 1
      %p178 = scmp.eq.s32.totalorder %s23, 3
      %p179 = scmp.ne.s32.totalorder %s174, %s176
      %p180 = scmp.eq.s32.totalorder %s23, 0
      %p181 = por %p179, %p180
      %p182 = scmp.ne.s32.totalorder %s174, %s176
      %p183 = scmp.eq.s32.totalorder %s28, 3
      %p184 = por %p182, %p183
      %p185 = scmp.ne.s32.totalorder %s176, %s177
      %p186 = scmp.eq.s32.totalorder %s28, 0
      %p187 = por %p185, %p186
      %p188 = scmp.ne.s32.totalorder %s176, %s177
      %p189 = scmp.eq.s32.totalorder %s29, 3
      %p190 = por %p188, %p189
      %p192 = scmp.ne.s32.totalorder %s177, %s191
      %p193 = scmp.eq.s32.totalorder %s29, 0
      %p194 = por %p192, %p193
      %s196 = sadd.s32 %s195, 1
      %p199 = scmp.eq.s32.totalorder %s23, 3
      %p200 = scmp.ne.s32.totalorder %s195, %s197
      %p201 = scmp.eq.s32.totalorder %s23, 0
      %p202 = por %p200, %p201
      %p203 = scmp.ne.s32.totalorder %s195, %s197
      %p204 = scmp.eq.s32.totalorder %s28, 3
      %p205 = por %p203, %p204
      %p206 = scmp.ne.s32.totalorder %s197, %s198
      %p207 = scmp.eq.s32.totalorder %s28, 0
      %p208 = por %p206, %p207
      %p209 = scmp.ne.s32.totalorder %s197, %s198
      %p210 = scmp.eq.s32.totalorder %s29, 3
      %p211 = por %p209, %p210
      %p213 = scmp.ne.s32.totalorder %s198, %s212
      %p214 = scmp.eq.s32.totalorder %s29, 0
      %p215 = por %p213, %p214
      %s217 = sadd.s32 %s216, 1
      %p220 = scmp.eq.s32.totalorder %s23, 3
      %p221 = scmp.ne.s32.totalorder %s216, %s218
      %p222 = scmp.eq.s32.totalorder %s23, 0
      %p223 = por %p221, %p222
      %p224 = scmp.ne.s32.totalorder %s216, %s218
      %p225 = scmp.eq.s32.totalorder %s28, 3
      %p226 = por %p224, %p225
      %p227 = scmp.ne.s32.totalorder %s218, %s219
      %p228 = scmp.eq.s32.totalorder %s28, 0
      %p229 = por %p227, %p228
      %p230 = scmp.ne.s32.totalorder %s218, %s219
      %p231 = scmp.eq.s32.totalorder %s29, 3
      %p232 = por %p230, %p231
      %p234 = scmp.ne.s32.totalorder %s219, %s233
      %p235 = scmp.eq.s32.totalorder %s29, 0
      %p236 = por %p234, %p235
      %s238 = sadd.s32 %s237, 1
      %p241 = scmp.eq.s32.totalorder %s23, 3
      %p242 = scmp.ne.s32.totalorder %s237, %s239
      %p243 = scmp.eq.s32.totalorder %s23, 0
      %p244 = por %p242, %p243
      %p245 = scmp.ne.s32.totalorder %s237, %s239
      %p246 = scmp.eq.s32.totalorder %s28, 3
      %p247 = por %p245, %p246
      %p248 = scmp.ne.s32.totalorder %s239, %s240
      %p249 = scmp.eq.s32.totalorder %s28, 0
      %p250 = por %p248, %p249
      %p251 = scmp.ne.s32.totalorder %s239, %s240
      %p252 = scmp.eq.s32.totalorder %s29, 3
      %p253 = por %p251, %p252
      %p255 = scmp.ne.s32.totalorder %s240, %s254
      %p256 = scmp.eq.s32.totalorder %s29, 0
      %p257 = por %p255, %p256
      %s259 = sadd.s32 %s258, 1
      %p262 = scmp.eq.s32.totalorder %s23, 3
      %p263 = scmp.ne.s32.totalorder %s258, %s260
      %p264 = scmp.eq.s32.totalorder %s23, 0
      %p265 = por %p263, %p264
      %p266 = scmp.ne.s32.totalorder %s258, %s260
      %p267 = scmp.eq.s32.totalorder %s28, 3
      %p268 = por %p266, %p267
      %p269 = scmp.ne.s32.totalorder %s260, %s261
      %p270 = scmp.eq.s32.totalorder %s28, 0
      %p271 = por %p269, %p270
      %p272 = scmp.ne.s32.totalorder %s260, %s261
      %p273 = scmp.eq.s32.totalorder %s29, 3
      %p274 = por %p272, %p273
      %p276 = scmp.ne.s32.totalorder %s261, %s275
      %p277 = scmp.eq.s32.totalorder %s29, 0
      %p278 = por %p276, %p277
      %s279 = ssub.s32 %s30, %s42
      %s280 = ssub.s32 %s31, %s38
      %s281 = sor.u32 %s279, %s280
      %p282 = scmp.eq.s32.totalorder %s281, 0
      %s284 = sadd.s32 %s283, 1
      %s285 = scalar_select %p282, %s283, %s284
      %p288 = pneg %p282
      %p289 = scmp.eq.s32.totalorder %s23, 3
      %p290 = por %p288, %p289
      %p291 = scmp.ne.s32.totalorder %s283, %s286
      %p292 = scmp.eq.s32.totalorder %s23, 0
      %p293 = por %p291, %p292
      %p294 = scmp.ne.s32.totalorder %s283, %s286
      %p295 = scmp.eq.s32.totalorder %s28, 3
      %p296 = por %p294, %p295
      %p297 = scmp.ne.s32.totalorder %s286, %s287
      %p298 = scmp.eq.s32.totalorder %s28, 0
      %p299 = por %p297, %p298
      %p300 = scmp.ne.s32.totalorder %s286, %s287
      %p301 = scmp.eq.s32.totalorder %s29, 3
      %p302 = por %p300, %p301
      %p304 = scmp.ne.s32.totalorder %s287, %s303
      %p305 = scmp.eq.s32.totalorder %s29, 0
      %p306 = por %p304, %p305
      %p307 = scmp.le.s32.totalorder 1, %s23
      %p308 = scmp.lt.s32.totalorder %s23, 5
      %p309 = pnand %p307, %p308
      %p310 = pneg %p309
      // Predicated region
      $region9: #{tpu_custom_call.1} parent=5 // pred_check
        _
      $region10: #{tpu_custom_call.1} parent=5 // pred_check_branch
        %312 = sbr.rel (%p309) target = $region12
      $region11: #{tpu_custom_call.1} parent=5 // pred_region
        %s313 = ssub.s32 %s23, 1
        // Predicated region
        $region13: #{tpu_custom_call.1} parent=11 // pred_check
          %p314 = pneg %p82
        $region14: #{tpu_custom_call.1} parent=11 // pred_check_branch
          %316 = sbr.rel (%p314) target = $region16
        $region15: #{tpu_custom_call.1} parent=11 // pred_region
          _
        $region16: #{tpu_custom_call.1} parent=11 // pred_fallthru
          _
        // Predicated region
        $region17: #{tpu_custom_call.1} parent=11 // pred_check
          %p317 = pneg %p103
        $region18: #{tpu_custom_call.1} parent=11 // pred_check_branch
          %319 = sbr.rel (%p317) target = $region20
        $region19: #{tpu_custom_call.1} parent=11 // pred_region
          _
        $region20: #{tpu_custom_call.1} parent=11 // pred_fallthru
          _
        // Predicated region
        $region21: #{tpu_custom_call.1} parent=11 // pred_check
          %p320 = pneg %p124
        $region22: #{tpu_custom_call.1} parent=11 // pred_check_branch
          %322 = sbr.rel (%p320) target = $region24
        $region23: #{tpu_custom_call.1} parent=11 // pred_region
          _
        $region24: #{tpu_custom_call.1} parent=11 // pred_fallthru
          _
        // Predicated region
        $region25: #{tpu_custom_call.1} parent=11 // pred_check
          %p323 = pneg %p145
        $region26: #{tpu_custom_call.1} parent=11 // pred_check_branch
          %325 = sbr.rel (%p323) target = $region28
        $region27: #{tpu_custom_call.1} parent=11 // pred_region
          _
        $region28: #{tpu_custom_call.1} parent=11 // pred_fallthru
          _
        // Predicated region
        $region29: #{tpu_custom_call.1} parent=11 // pred_check
          %p326 = pneg %p166
        $region30: #{tpu_custom_call.1} parent=11 // pred_check_branch
          %328 = sbr.rel (%p326) target = $region32
        $region31: #{tpu_custom_call.1} parent=11 // pred_region
          _
        $region32: #{tpu_custom_call.1} parent=11 // pred_fallthru
          _
        // Predicated region
        $region33: #{tpu_custom_call.1} parent=11 // pred_check
          %p329 = pneg %p187
        $region34: #{tpu_custom_call.1} parent=11 // pred_check_branch
          %331 = sbr.rel (%p329) target = $region36
        $region35: #{tpu_custom_call.1} parent=11 // pred_region
          _
        $region36: #{tpu_custom_call.1} parent=11 // pred_fallthru
          _
        // Predicated region
        $region37: #{tpu_custom_call.1} parent=11 // pred_check
          %p332 = pneg %p208
        $region38: #{tpu_custom_call.1} parent=11 // pred_check_branch
          %334 = sbr.rel (%p332) target = $region40
        $region39: #{tpu_custom_call.1} parent=11 // pred_region
          _
        $region40: #{tpu_custom_call.1} parent=11 // pred_fallthru
          _
        // Predicated region
        $region41: #{tpu_custom_call.1} parent=11 // pred_check
          %p335 = pneg %p229
        $region42: #{tpu_custom_call.1} parent=11 // pred_check_branch
          %337 = sbr.rel (%p335) target = $region44
        $region43: #{tpu_custom_call.1} parent=11 // pred_region
          _
        $region44: #{tpu_custom_call.1} parent=11 // pred_fallthru
          _
        // Predicated region
        $region45: #{tpu_custom_call.1} parent=11 // pred_check
          %p338 = pneg %p250
        $region46: #{tpu_custom_call.1} parent=11 // pred_check_branch
          %340 = sbr.rel (%p338) target = $region48
        $region47: #{tpu_custom_call.1} parent=11 // pred_region
          _
        $region48: #{tpu_custom_call.1} parent=11 // pred_fallthru
          _
        // Predicated region
        $region49: #{tpu_custom_call.1} parent=11 // pred_check
          %p341 = pneg %p271
        $region50: #{tpu_custom_call.1} parent=11 // pred_check_branch
          %343 = sbr.rel (%p341) target = $region52
        $region51: #{tpu_custom_call.1} parent=11 // pred_region
          _
        $region52: #{tpu_custom_call.1} parent=11 // pred_fallthru
          _
      $region12: #{tpu_custom_call.1} parent=5 // pred_fallthru
        _
      %p344 = scmp.lt.s32.totalorder %s23, 4
      // Predicated region
      $region53: #{tpu_custom_call.1} parent=5 // pred_check
        %p345 = pneg %p344
      $region54: #{tpu_custom_call.1} parent=5 // pred_check_branch
        %347 = sbr.rel (%p345) target = $region56
      $region55: #{tpu_custom_call.1} parent=5 // pred_region
        // Predicated region
        $region57: #{tpu_custom_call.1} parent=55 // pred_check
          %p348 = pneg %p55
        $region58: #{tpu_custom_call.1} parent=55 // pred_check_branch
          %350 = sbr.rel (%p348) target = $region60
        $region59: #{tpu_custom_call.1} parent=55 // pred_region
          %s351 = sand.u32 %s45, 1
          %s352 = scalar_lea.sflag [#allocation5], %s351
          %s353 = sand.u32 %s45, 1
          %s354 = smul.addr %s353, 32
          %s355 = scalar_lea.vmem [#allocation4], %s354
          %s357 = ssub.s32 512, 512
          %358 = vsyncadd %s352, %s357
          %s359 = smul.addr %s30, 4
          %s360 = smul.addr %s359, 128
          %s361 = scalar_lea.hbm %s0, %s360
          %s363 = sshll.u32 %s355, 4
          %s364 = int_to_ptr.vmem [resolvable:$true] %s363
          %366 = dma.hbm_to_vmem [thread:$0]  %s361, 512, %s364, %s352
        $region60: #{tpu_custom_call.1} parent=55 // pred_fallthru
          _
      $region56: #{tpu_custom_call.1} parent=5 // pred_fallthru
        _
      %p367 = scmp.le.s32.totalorder 1, %s23
      %p368 = scmp.lt.s32.totalorder %s23, 5
      %p369 = pnand %p367, %p368
      %p370 = pneg %p369
      // Predicated region
      $region61: #{tpu_custom_call.1} parent=5 // pred_check
        _
      $region62: #{tpu_custom_call.1} parent=5 // pred_check_branch
        %372 = sbr.rel (%p369) target = $region64
      $region63: #{tpu_custom_call.1} parent=5 // pred_region
        %s373 = ssub.s32 %s23, 1
        %s374 = sand.u32 %s48, 1
        %s375 = scalar_lea.sflag [#allocation5], %s374
        %s376 = sand.u32 %s48, 1
        %s377 = smul.addr %s376, 32
        %s378 = scalar_lea.vmem [#allocation4], %s377
        // Predicated region
        $region65: #{tpu_custom_call.1} parent=63 // pred_check
          %p379 = pneg %p61
        $region66: #{tpu_custom_call.1} parent=63 // pred_check_branch
          %381 = sbr.rel (%p379) target = $region68
        $region67: #{tpu_custom_call.1} parent=63 // pred_region
          %382 = dma.done %s375, 512
        $region68: #{tpu_custom_call.1} parent=63 // pred_fallthru
          _
        %s383 = sand.u32 %s48, 1
        %s384 = scalar_lea.sflag [#allocation5], %s383
        %s385 = sand.u32 %s48, 1
        %s386 = smul.addr %s385, 32
        %s387 = scalar_lea.vmem [#allocation4], %s386
        %p388 = pneg %p61
        %p389 = pneg %p58
        %p390 = pneg %p82
        %p391 = pneg %p79
        %p392 = pneg %p103
        %p393 = pneg %p100
        %p394 = pneg %p124
        %p395 = pneg %p121
        %p396 = pneg %p145
        %p397 = pneg %p142
        %p398 = pneg %p166
        %p399 = pneg %p163
        %p400 = pneg %p187
        %p401 = pneg %p184
        %p402 = pneg %p208
        %p403 = pneg %p205
        %p404 = pneg %p229
        %p405 = pneg %p226
        %p406 = pneg %p250
        %p407 = pneg %p247
        %p408 = pneg %p271
        %p409 = pneg %p268
        %p410 = pneg %p299
        %p411 = pneg %p296
        %s412 = sand.u32 %s286, 1
        %s413 = scalar_lea.sflag [#allocation6], %s412
        %s414 = sand.u32 %s286, 1
        %s415 = smul.addr %s414, 16
        %s416 = scalar_lea.vmem [#allocation7], %s415
        %s417 = smul.u32 2, %s33
        %p419 = scmp.eq.s32.totalorder %s33, 0
        // Predicated region
        $region69: #{tpu_custom_call.1} parent=63 // pred_check
          %p420 = pneg %p419
        $region70: #{tpu_custom_call.1} parent=63 // pred_check_branch
          %422 = sbr.rel (%p420) target = $region72
        $region71: #{tpu_custom_call.1} parent=63 // pred_region
          %v423 = vld [vmem:[%s378] sm:$0xff]
          %v424 = vld [vmem:[%s378 + $0x8] sm:$0xff]
          %v425 = vld [vmem:[%s378 + $0x10] sm:$0xff]
          %v426 = vld [vmem:[%s378 + $0x18] sm:$0xff]
          %v427 = vld [vmem:[%s1] sm:$0xff]
          %429 = vset.pattern.permute.xlu0 0
          %430 = vperm.xlu0 %429, %v427
          %v431 = vpop.permute.xlu0 %430
          %v433 = vmul.f32 %v423, %v431
          %v434 = vmul.f32 %v424, %v431
          %v435 = vmul.f32 %v425, %v431
          %v436 = vmul.f32 %v426, %v431
          %v437 = vld [vmem:[%s2] sm:$0xff]
          %439 = vset.pattern.permute.xlu0 0
          %440 = vperm.xlu0 %439, %v437
          %v441 = vpop.permute.xlu0 %440
          %v443 = vadd.f32 %v433, %v441
          %v444 = vadd.f32 %v434, %v441
          %v445 = vadd.f32 %v435, %v441
          %v446 = vadd.f32 %v436, %v441
          %v447 = vmax.f32 %v443, 0.0
          %v448 = vmax.f32 %v444, 0.0
          %v449 = vmax.f32 %v445, 0.0
          %v450 = vmax.f32 %v446, 0.0
          %v451 = vmin.f32 %v447, 6.0
          %v452 = vmin.f32 %v448, 6.0
          %v453 = vmin.f32 %v449, 6.0
          %v454 = vmin.f32 %v450, 6.0
          %v455 = vpack.c.bf16 %v451, %v451
          %v456 = vpack.c.bf16 %v452, %v452
          %v457 = vpack.c.bf16 %v453, %v453
          %v458 = vpack.c.bf16 %v454, %v454
          %v459 = vld [vmem:[%s5] sm:$0xff]
          %v460 = vpack.c.bf16 %v459, %v459
          %v461 = vld [vmem:[%s6] sm:$0xff]
          %463 = vset.pattern.permute.xlu0 0
          %464 = vperm.xlu0 %463, %v461
          %v465 = vpop.permute.xlu0 %464
          %467 = vxpose.xlu0.c.b16.start [1/8] %v460, 128
          %468 = vxpose.xlu0.c.b16.cont [2/8] 0, 128
          %469 = vxpose.xlu0.c.b16.cont [3/8] 0, 128
          %470 = vxpose.xlu0.c.b16.cont [4/8] 0, 128
          %471 = vxpose.xlu0.c.b16.cont [5/8] 0, 128
          %472 = vxpose.xlu0.c.b16.cont [6/8] 0, 128
          %473 = vxpose.xlu0.c.b16.cont [7/8] 0, 128
          %474 = vxpose.xlu0.c.b16.end [8/8] 0, 128
          %v475 = vpop.trf.xlu0
          %v476 = vpop.trf.xlu0
          %v477 = vpop.trf.xlu0
          %v478 = vpop.trf.xlu0
          %v479 = vpop.trf.xlu0
          %v480 = vpop.trf.xlu0
          %v481 = vpop.trf.xlu0
          %v482 = vpop.trf.xlu0
          %vm483 = vcmask 64512
          %v485 = vsel %vm483, %v475, 0
          %vm487 = vcmask 1043456
          %v489 = vsel %vm487, %v455, 0
          %v492 = vsel %vm487, %v456, 0
          %v495 = vsel %vm487, %v457, 0
          %v498 = vsel %vm487, %v458, 0
          %500 = vmatprep.subr.bf16.mxu0 %v492
          %501 = vmatpush1.bf16.msra.mxu0 %v489
          %502 = vmatprep.subr.bf16.mxu0 0
          %503 = vmatpush1.bf16.msra.mxu0 0
          %504 = vmatprep.subr.bf16.mxu0 0
          %505 = vmatpush1.bf16.msra.mxu0 0
          %506 = vmatprep.subr.bf16.mxu0 0
          %507 = vmatpush1.bf16.msra.mxu0 0
          %508 = vmatprep.subr.bf16.mxu0 0
          %509 = vmatpush1.bf16.msra.mxu0 0
          %510 = vmatprep.subr.bf16.mxu0 0
          %511 = vmatpush1.bf16.msra.mxu0 0
          %512 = vmatprep.subr.bf16.mxu0 0
          %513 = vmatpush1.bf16.msra.mxu0 0
          %514 = vmatprep.subr.bf16.mxu0 0
          %515 = vmatpush1.bf16.msra.mxu0 0
          %516 = vmatprep.subr.bf16.mxu0 0
          %517 = vmatpush1.bf16.msra.mxu0 0
          %518 = vmatprep.subr.bf16.mxu0 0
          %519 = vmatpush1.bf16.msra.mxu0 0
          %520 = vmatprep.subr.bf16.mxu0 0
          %521 = vmatpush1.bf16.msra.mxu0 0
          %522 = vmatprep.subr.bf16.mxu0 0
          %523 = vmatpush1.bf16.msra.mxu0 0
          %524 = vmatprep.subr.bf16.mxu0 0
          %525 = vmatpush1.bf16.msra.mxu0 0
          %526 = vmatprep.subr.bf16.mxu0 0
          %527 = vmatpush1.bf16.msra.mxu0 0
          %528 = vmatprep.subr.bf16.mxu0 0
          %529 = vmatpush1.bf16.msra.mxu0 0
          %530 = vmatprep.subr.bf16.mxu0 0
          %531 = vmatpush1.bf16.msra.mxu0 0
          %532 = vmatprep.mubr.bf16.mxu0 0
          %533 = vmatmul.mubr.bf16.gmra.mrb[0].mxu0 %v485
          %v534 = vpop.f32.mrb[0].mxu0
          %v535 = vadd.f32 %v465, %v534
          %v536 = vpop.f32.mrb[0].mxu0
          %v537 = vadd.f32 %v465, %v536
          %v538 = vpop.f32.mrb[0].mxu0
          %v539 = vpop.f32.mrb[0].mxu0
          %540 = vdwg.mxu0
          %541 = vmatprep.subr.bf16.mxu0 %v498
          %542 = vmatpush1.bf16.msra.mxu0 %v495
          %543 = vmatprep.subr.bf16.mxu0 0
          %544 = vmatpush1.bf16.msra.mxu0 0
          %545 = vmatprep.subr.bf16.mxu0 0
          %546 = vmatpush1.bf16.msra.mxu0 0
          %547 = vmatprep.subr.bf16.mxu0 0
          %548 = vmatpush1.bf16.msra.mxu0 0
          %549 = vmatprep.subr.bf16.mxu0 0
          %550 = vmatpush1.bf16.msra.mxu0 0
          %551 = vmatprep.subr.bf16.mxu0 0
          %552 = vmatpush1.bf16.msra.mxu0 0
          %553 = vmatprep.subr.bf16.mxu0 0
          %554 = vmatpush1.bf16.msra.mxu0 0
          %555 = vmatprep.subr.bf16.mxu0 0
          %556 = vmatpush1.bf16.msra.mxu0 0
          %557 = vmatprep.subr.bf16.mxu0 0
          %558 = vmatpush1.bf16.msra.mxu0 0
          %559 = vmatprep.subr.bf16.mxu0 0
          %560 = vmatpush1.bf16.msra.mxu0 0
          %561 = vmatprep.subr.bf16.mxu0 0
          %562 = vmatpush1.bf16.msra.mxu0 0
          %563 = vmatprep.subr.bf16.mxu0 0
          %564 = vmatpush1.bf16.msra.mxu0 0
          %565 = vmatprep.subr.bf16.mxu0 0
          %566 = vmatpush1.bf16.msra.mxu0 0
          %567 = vmatprep.subr.bf16.mxu0 0
          %568 = vmatpush1.bf16.msra.mxu0 0
          %569 = vmatprep.subr.bf16.mxu0 0
          %570 = vmatpush1.bf16.msra.mxu0 0
          %571 = vmatprep.subr.bf16.mxu0 0
          %572 = vmatpush1.bf16.msra.mxu0 0
          %573 = vmatprep.mubr.bf16.mxu0 0
          %574 = vmatmul.mubr.bf16.gmra.mrb[0].mxu0 %v485
          %v575 = vpop.f32.mrb[0].mxu0
          %v576 = vadd.f32 %v465, %v575
          %v577 = vpop.f32.mrb[0].mxu0
          %v578 = vadd.f32 %v465, %v577
          %v579 = vpop.f32.mrb[0].mxu0
          %v580 = vpop.f32.mrb[0].mxu0
          %581 = vdwg.mxu0
          %v582 = vpack.c.bf16 %v535, %v535
          %v583 = vpack.c.bf16 %v537, %v537
          %v584 = vpack.c.bf16 %v576, %v576
          %v585 = vpack.c.bf16 %v578, %v578
          %v590 = vunpack.c.l.b16 %v582
          %v591 = vunpack.c.l.b16 %v583
          %v592 = vunpack.c.l.b16 %v584
          %v593 = vunpack.c.l.b16 %v585
          %v594 = vpack.c.b16 %v591, %v590
          %v595 = vpack.c.b16 %v593, %v592
          %598 = vst [vmem:[#allocation2] sm:$0xff] %v594
          %599 = vst [vmem:[#allocation2 + $0x8] sm:$0xff] %v595
          %v600 = vld [vmem:[%s7] sm:$0xff]
          %v601 = vpack.c.bf16 %v600, %v600
          %v602 = vld [vmem:[%s8] sm:$0xff]
          %604 = vset.pattern.permute.xlu0 0
          %605 = vperm.xlu0 %604, %v602
          %v606 = vpop.permute.xlu0 %605
          %608 = vxpose.xlu0.c.b16.start [1/8] %v601, 128
          %609 = vxpose.xlu0.c.b16.cont [2/8] 0, 128
          %610 = vxpose.xlu0.c.b16.cont [3/8] 0, 128
          %611 = vxpose.xlu0.c.b16.cont [4/8] 0, 128
          %612 = vxpose.xlu0.c.b16.cont [5/8] 0, 128
          %613 = vxpose.xlu0.c.b16.cont [6/8] 0, 128
          %614 = vxpose.xlu0.c.b16.cont [7/8] 0, 128
          %615 = vxpose.xlu0.c.b16.end [8/8] 0, 128
          %v616 = vpop.trf.xlu0
          %v617 = vpop.trf.xlu0
          %v618 = vpop.trf.xlu0
          %v619 = vpop.trf.xlu0
          %v620 = vpop.trf.xlu0
          %v621 = vpop.trf.xlu0
          %v622 = vpop.trf.xlu0
          %v623 = vpop.trf.xlu0
          %v625 = vsel %vm483, %v616, 0
          %627 = vmatprep.subr.bf16.mxu0 %v492
          %628 = vmatpush1.bf16.msra.mxu0 %v489
          %629 = vmatprep.subr.bf16.mxu0 0
          %630 = vmatpush1.bf16.msra.mxu0 0
          %631 = vmatprep.subr.bf16.mxu0 0
          %632 = vmatpush1.bf16.msra.mxu0 0
          %633 = vmatprep.subr.bf16.mxu0 0
          %634 = vmatpush1.bf16.msra.mxu0 0
          %635 = vmatprep.subr.bf16.mxu0 0
          %636 = vmatpush1.bf16.msra.mxu0 0
          %637 = vmatprep.subr.bf16.mxu0 0
          %638 = vmatpush1.bf16.msra.mxu0 0
          %639 = vmatprep.subr.bf16.mxu0 0
          %640 = vmatpush1.bf16.msra.mxu0 0
          %641 = vmatprep.subr.bf16.mxu0 0
          %642 = vmatpush1.bf16.msra.mxu0 0
          %643 = vmatprep.subr.bf16.mxu0 0
          %644 = vmatpush1.bf16.msra.mxu0 0
          %645 = vmatprep.subr.bf16.mxu0 0
          %646 = vmatpush1.bf16.msra.mxu0 0
          %647 = vmatprep.subr.bf16.mxu0 0
          %648 = vmatpush1.bf16.msra.mxu0 0
          %649 = vmatprep.subr.bf16.mxu0 0
          %650 = vmatpush1.bf16.msra.mxu0 0
          %651 = vmatprep.subr.bf16.mxu0 0
          %652 = vmatpush1.bf16.msra.mxu0 0
          %653 = vmatprep.subr.bf16.mxu0 0
          %654 = vmatpush1.bf16.msra.mxu0 0
          %655 = vmatprep.subr.bf16.mxu0 0
          %656 = vmatpush1.bf16.msra.mxu0 0
          %657 = vmatprep.subr.bf16.mxu0 0
          %658 = vmatpush1.bf16.msra.mxu0 0
          %659 = vmatprep.mubr.bf16.mxu0 0
          %660 = vmatmul.mubr.bf16.gmra.mrb[0].mxu0 %v625
          %v661 = vpop.f32.mrb[0].mxu0
          %v662 = vadd.f32 %v606, %v661
          %v663 = vpop.f32.mrb[0].mxu0
          %v664 = vadd.f32 %v606, %v663
          %v665 = vpop.f32.mrb[0].mxu0
          %v666 = vpop.f32.mrb[0].mxu0
          %667 = vdwg.mxu0
          %668 = vmatprep.subr.bf16.mxu0 %v498
          %669 = vmatpush1.bf16.msra.mxu0 %v495
          %670 = vmatprep.subr.bf16.mxu0 0
          %671 = vmatpush1.bf16.msra.mxu0 0
          %672 = vmatprep.subr.bf16.mxu0 0
          %673 = vmatpush1.bf16.msra.mxu0 0
          %674 = vmatprep.subr.bf16.mxu0 0
          %675 = vmatpush1.bf16.msra.mxu0 0
          %676 = vmatprep.subr.bf16.mxu0 0
          %677 = vmatpush1.bf16.msra.mxu0 0
          %678 = vmatprep.subr.bf16.mxu0 0
          %679 = vmatpush1.bf16.msra.mxu0 0
          %680 = vmatprep.subr.bf16.mxu0 0
          %681 = vmatpush1.bf16.msra.mxu0 0
          %682 = vmatprep.subr.bf16.mxu0 0
          %683 = vmatpush1.bf16.msra.mxu0 0
          %684 = vmatprep.subr.bf16.mxu0 0
          %685 = vmatpush1.bf16.msra.mxu0 0
          %686 = vmatprep.subr.bf16.mxu0 0
          %687 = vmatpush1.bf16.msra.mxu0 0
          %688 = vmatprep.subr.bf16.mxu0 0
          %689 = vmatpush1.bf16.msra.mxu0 0
          %690 = vmatprep.subr.bf16.mxu0 0
          %691 = vmatpush1.bf16.msra.mxu0 0
          %692 = vmatprep.subr.bf16.mxu0 0
          %693 = vmatpush1.bf16.msra.mxu0 0
          %694 = vmatprep.subr.bf16.mxu0 0
          %695 = vmatpush1.bf16.msra.mxu0 0
          %696 = vmatprep.subr.bf16.mxu0 0
          %697 = vmatpush1.bf16.msra.mxu0 0
          %698 = vmatprep.subr.bf16.mxu0 0
          %699 = vmatpush1.bf16.msra.mxu0 0
          %700 = vmatprep.mubr.bf16.mxu0 0
          %701 = vmatmul.mubr.bf16.gmra.mrb[0].mxu0 %v625
          %v702 = vpop.f32.mrb[0].mxu0
          %v703 = vadd.f32 %v606, %v702
          %v704 = vpop.f32.mrb[0].mxu0
          %v705 = vadd.f32 %v606, %v704
          %v706 = vpop.f32.mrb[0].mxu0
          %v707 = vpop.f32.mrb[0].mxu0
          %708 = vdwg.mxu0
          %v709 = vpack.c.bf16 %v662, %v662
          %v710 = vpack.c.bf16 %v664, %v664
          %v711 = vpack.c.bf16 %v703, %v703
          %v712 = vpack.c.bf16 %v705, %v705
          %v717 = vunpack.c.l.b16 %v709
          %v718 = vunpack.c.l.b16 %v710
          %v719 = vunpack.c.l.b16 %v711
          %v720 = vunpack.c.l.b16 %v712
          %v721 = vpack.c.b16 %v718, %v717
          %v722 = vpack.c.b16 %v720, %v719
          %725 = vst [vmem:[#allocation3] sm:$0xff] %v721
          %726 = vst [vmem:[#allocation3 + $0x8] sm:$0xff] %v722
        $region72: #{tpu_custom_call.1} parent=63 // pred_fallthru
          _
        %s727 = smul.u32 %s33, 256
        %s728 = sshra.s32 %s727, 7
        %s729 = sand.u32 %s727, 127
        %s730 = smul.addr %s728, 8
        %s731 = scalar_lea.vmem %s378, %s730 [#allocation4]
        %v732 = vld [vmem:[%s731] sm:$0xff]
        %v733 = vld [vmem:[%s731 + $0x8] sm:$0xff]
        %v734 = vld [vmem:[%s1] sm:$0xff]
        %736 = vset.pattern.permute.xlu0 0
        %737 = vperm.xlu0 %736, %v734
        %v738 = vpop.permute.xlu0 %737
        %v740 = vmul.f32 %v732, %v738
        %v741 = vmul.f32 %v733, %v738
        %v742 = vld [vmem:[%s2] sm:$0xff]
        %744 = vset.pattern.permute.xlu0 0
        %745 = vperm.xlu0 %744, %v742
        %v746 = vpop.permute.xlu0 %745
        %v748 = vadd.f32 %v740, %v746
        %v749 = vadd.f32 %v741, %v746
        %v750 = vmax.f32 %v748, 0.0
        %v751 = vmax.f32 %v749, 0.0
        %v752 = vmin.f32 %v750, 6.0
        %v753 = vmin.f32 %v751, 6.0
        %v754 = vld [vmem:[%s3] sm:$0xff]
        %v755 = vpack.c.bf16 %v754, %v754
        %v756 = vpack.c.bf16 %v752, %v752
        %v757 = vpack.c.bf16 %v753, %v753
        %v758 = vld [vmem:[%s4] sm:$0xff]
        %760 = vset.pattern.permute.xlu0 0
        %761 = vperm.xlu0 %760, %v758
        %v762 = vpop.permute.xlu0 %761
        %764 = vxpose.xlu0.c.b16.start [1/8] %v755, 128
        %765 = vxpose.xlu0.c.b16.cont [2/8] 0, 128
        %766 = vxpose.xlu0.c.b16.cont [3/8] 0, 128
        %767 = vxpose.xlu0.c.b16.cont [4/8] 0, 128
        %768 = vxpose.xlu0.c.b16.cont [5/8] 0, 128
        %769 = vxpose.xlu0.c.b16.cont [6/8] 0, 128
        %770 = vxpose.xlu0.c.b16.cont [7/8] 0, 128
        %771 = vxpose.xlu0.c.b16.end [8/8] 0, 128
        %v772 = vpop.trf.xlu0
        %v773 = vpop.trf.xlu0
        %v774 = vpop.trf.xlu0
        %v775 = vpop.trf.xlu0
        %v776 = vpop.trf.xlu0
        %v777 = vpop.trf.xlu0
        %v778 = vpop.trf.xlu0
        %v779 = vpop.trf.xlu0
        %vm780 = vcmask 64512
        %v782 = vsel %vm780, %v772, 0
        %vm784 = vcmask 1043456
        %v786 = vsel %vm784, %v756, 0
        %v789 = vsel %vm784, %v757, 0
        %791 = vmatprep.subr.bf16.mxu0 %v789
        %792 = vmatpush1.bf16.msra.mxu0 %v786
        %793 = vmatprep.subr.bf16.mxu0 0
        %794 = vmatpush1.bf16.msra.mxu0 0
        %795 = vmatprep.subr.bf16.mxu0 0
        %796 = vmatpush1.bf16.msra.mxu0 0
        %797 = vmatprep.subr.bf16.mxu0 0
        %798 = vmatpush1.bf16.msra.mxu0 0
        %799 = vmatprep.subr.bf16.mxu0 0
        %800 = vmatpush1.bf16.msra.mxu0 0
        %801 = vmatprep.subr.bf16.mxu0 0
        %802 = vmatpush1.bf16.msra.mxu0 0
        %803 = vmatprep.subr.bf16.mxu0 0
        %804 = vmatpush1.bf16.msra.mxu0 0
        %805 = vmatprep.subr.bf16.mxu0 0
        %806 = vmatpush1.bf16.msra.mxu0 0
        %807 = vmatprep.subr.bf16.mxu0 0
        %808 = vmatpush1.bf16.msra.mxu0 0
        %809 = vmatprep.subr.bf16.mxu0 0
        %810 = vmatpush1.bf16.msra.mxu0 0
        %811 = vmatprep.subr.bf16.mxu0 0
        %812 = vmatpush1.bf16.msra.mxu0 0
        %813 = vmatprep.subr.bf16.mxu0 0
        %814 = vmatpush1.bf16.msra.mxu0 0
        %815 = vmatprep.subr.bf16.mxu0 0
        %816 = vmatpush1.bf16.msra.mxu0 0
        %817 = vmatprep.subr.bf16.mxu0 0
        %818 = vmatpush1.bf16.msra.mxu0 0
        %819 = vmatprep.subr.bf16.mxu0 0
        %820 = vmatpush1.bf16.msra.mxu0 0
        %821 = vmatprep.subr.bf16.mxu0 0
        %822 = vmatpush1.bf16.msra.mxu0 0
        %823 = vmatprep.mubr.bf16.mxu0 0
        %824 = vmatmul.mubr.bf16.gmra.mrb[0].mxu0 %v782
        %v825 = vpop.f32.mrb[0].mxu0
        %v826 = vadd.f32 %v762, %v825
        %v827 = vpop.f32.mrb[0].mxu0
        %v828 = vadd.f32 %v762, %v827
        %v829 = vpop.f32.mrb[0].mxu0
        %v830 = vpop.f32.mrb[0].mxu0
        %831 = vdwg.mxu0
        %v832 = vpack.c.bf16 %v826, %v826
        %v833 = vpack.c.bf16 %v828, %v828
        %v834 = vld [vmem:[#allocation2] sm:$0xf]
        %v835 = vld [vmem:[#allocation3] sm:$0xf]
        %836 = vxpose.xlu0.c.b16.start [1/8] %v834, 128
        %837 = vxpose.xlu0.c.b16.cont [2/8] 0, 128
        %838 = vxpose.xlu0.c.b16.cont [3/8] 0, 128
        %839 = vxpose.xlu0.c.b16.cont [4/8] 0, 128
        %840 = vxpose.xlu0.c.b16.cont [5/8] 0, 128
        %841 = vxpose.xlu0.c.b16.cont [6/8] 0, 128
        %842 = vxpose.xlu0.c.b16.cont [7/8] 0, 128
        %843 = vxpose.xlu0.c.b16.end [8/8] 0, 128
        %v844 = vpop.trf.xlu0
        %v845 = vpop.trf.xlu0
        %v846 = vpop.trf.xlu0
        %v847 = vpop.trf.xlu0
        %v848 = vpop.trf.xlu0
        %v849 = vpop.trf.xlu0
        %v850 = vpop.trf.xlu0
        %v851 = vpop.trf.xlu0
        %v853 = vsel %vm780, %v844, 0
        %v856 = vsel %vm780, %v845, 0
        %v859 = vsel %vm780, %v846, 0
        %v862 = vsel %vm780, %v847, 0
        %v865 = vsel %vm780, %v848, 0
        %v868 = vsel %vm780, %v849, 0
        %v871 = vsel %vm780, %v850, 0
        %v874 = vsel %vm780, %v851, 0
        %v877 = vsel %vm784, %v832, 0
        %v880 = vsel %vm784, %v833, 0
        %882 = vmatprep.subr.bf16.mxu0 %v880
        %883 = vmatpush1.bf16.msra.mxu0 %v877
        %884 = vmatprep.subr.bf16.mxu0 0
        %885 = vmatpush1.bf16.msra.mxu0 0
        %886 = vmatprep.subr.bf16.mxu0 0
        %887 = vmatpush1.bf16.msra.mxu0 0
        %888 = vmatprep.subr.bf16.mxu0 0
        %889 = vmatpush1.bf16.msra.mxu0 0
        %890 = vmatprep.subr.bf16.mxu0 0
        %891 = vmatpush1.bf16.msra.mxu0 0
        %892 = vmatprep.subr.bf16.mxu0 0
        %893 = vmatpush1.bf16.msra.mxu0 0
        %894 = vmatprep.subr.bf16.mxu0 0
        %895 = vmatpush1.bf16.msra.mxu0 0
        %896 = vmatprep.subr.bf16.mxu0 0
        %897 = vmatpush1.bf16.msra.mxu0 0
        %898 = vmatprep.subr.bf16.mxu0 0
        %899 = vmatpush1.bf16.msra.mxu0 0
        %900 = vmatprep.subr.bf16.mxu0 0
        %901 = vmatpush1.bf16.msra.mxu0 0
        %902 = vmatprep.subr.bf16.mxu0 0
        %903 = vmatpush1.bf16.msra.mxu0 0
        %904 = vmatprep.subr.bf16.mxu0 0
        %905 = vmatpush1.bf16.msra.mxu0 0
        %906 = vmatprep.subr.bf16.mxu0 0
        %907 = vmatpush1.bf16.msra.mxu0 0
        %908 = vmatprep.subr.bf16.mxu0 0
        %909 = vmatpush1.bf16.msra.mxu0 0
        %910 = vmatprep.subr.bf16.mxu0 0
        %911 = vmatpush1.bf16.msra.mxu0 0
        %912 = vmatprep.subr.bf16.mxu0 0
        %913 = vmatpush1.bf16.msra.mxu0 0
        %914 = vmatprep.mubr.bf16.mxu0 0
        %915 = vmatmul.mubr.bf16.gmra.mrb[0].mxu0 %v853
        %v916 = vpop.f32.mrb[0].mxu0
        %v917 = vadd.f32 0.0, %v916
        %v918 = vpop.f32.mrb[0].mxu0
        %v919 = vadd.f32 0.0, %v918
        %v920 = vpop.f32.mrb[0].mxu0
        %v921 = vadd.f32 0.0, %v920
        %v922 = vpop.f32.mrb[0].mxu0
        %v923 = vadd.f32 0.0, %v922
        %924 = vmatprep.mubr.bf16.mxu0 0
        %925 = vmatmul.mubr.bf16.gmra.mrb[0].mxu0 %v856
        %v926 = vpop.f32.mrb[0].mxu0
        %v927 = vadd.f32 0.0, %v926
        %v928 = vpop.f32.mrb[0].mxu0
        %v929 = vadd.f32 0.0, %v928
        %v930 = vpop.f32.mrb[0].mxu0
        %v931 = vadd.f32 0.0, %v930
        %v932 = vpop.f32.mrb[0].mxu0
        %v933 = vadd.f32 0.0, %v932
        %934 = vmatprep.mubr.bf16.mxu0 0
        %935 = vmatmul.mubr.bf16.gmra.mrb[0].mxu0 %v859
        %v936 = vpop.f32.mrb[0].mxu0
        %v937 = vadd.f32 0.0, %v936
        %v938 = vpop.f32.mrb[0].mxu0
        %v939 = vadd.f32 0.0, %v938
        %v940 = vpop.f32.mrb[0].mxu0
        %v941 = vadd.f32 0.0, %v940
        %v942 = vpop.f32.mrb[0].mxu0
        %v943 = vadd.f32 0.0, %v942
        %944 = vmatprep.mubr.bf16.mxu0 0
        %945 = vmatmul.mubr.bf16.gmra.mrb[0].mxu0 %v862
        %v946 = vpop.f32.mrb[0].mxu0
        %v947 = vadd.f32 0.0, %v946
        %v948 = vpop.f32.mrb[0].mxu0
        %v949 = vadd.f32 0.0, %v948
        %v950 = vpop.f32.mrb[0].mxu0
        %v951 = vadd.f32 0.0, %v950
        %v952 = vpop.f32.mrb[0].mxu0
        %v953 = vadd.f32 0.0, %v952
        %954 = vmatprep.mubr.bf16.mxu0 0
        %955 = vmatmul.mubr.bf16.gmra.mrb[0].mxu0 %v865
        %v956 = vpop.f32.mrb[0].mxu0
        %v957 = vadd.f32 0.0, %v956
        %v958 = vpop.f32.mrb[0].mxu0
        %v959 = vadd.f32 0.0, %v958
        %v960 = vpop.f32.mrb[0].mxu0
        %v961 = vadd.f32 0.0, %v960
        %v962 = vpop.f32.mrb[0].mxu0
        %v963 = vadd.f32 0.0, %v962
        %964 = vmatprep.mubr.bf16.mxu0 0
        %965 = vmatmul.mubr.bf16.gmra.mrb[0].mxu0 %v868
        %v966 = vpop.f32.mrb[0].mxu0
        %v967 = vadd.f32 0.0, %v966
        %v968 = vpop.f32.mrb[0].mxu0
        %v969 = vadd.f32 0.0, %v968
        %v970 = vpop.f32.mrb[0].mxu0
        %v971 = vadd.f32 0.0, %v970
        %v972 = vpop.f32.mrb[0].mxu0
        %v973 = vadd.f32 0.0, %v972
        %974 = vmatprep.mubr.bf16.mxu0 0
        %975 = vmatmul.mubr.bf16.gmra.mrb[0].mxu0 %v871
        %v976 = vpop.f32.mrb[0].mxu0
        %v977 = vadd.f32 0.0, %v976
        %v978 = vpop.f32.mrb[0].mxu0
        %v979 = vadd.f32 0.0, %v978
        %v980 = vpop.f32.mrb[0].mxu0
        %v981 = vadd.f32 0.0, %v980
        %v982 = vpop.f32.mrb[0].mxu0
        %v983 = vadd.f32 0.0, %v982
        %984 = vmatprep.mubr.bf16.mxu0 0
        %985 = vmatmul.mubr.bf16.gmra.mrb[0].mxu0 %v874
        %v986 = vpop.f32.mrb[0].mxu0
        %v987 = vadd.f32 0.0, %v986
        %v988 = vpop.f32.mrb[0].mxu0
        %v989 = vadd.f32 0.0, %v988
        %v990 = vpop.f32.mrb[0].mxu0
        %v991 = vadd.f32 0.0, %v990
        %v992 = vpop.f32.mrb[0].mxu0
        %v993 = vadd.f32 0.0, %v992
        %994 = vdwg.mxu0
        %v995 = vmax.f32 %v917, %v927
        %v996 = vmax.f32 %v921, %v931
        %v997 = vmax.f32 %v995, %v937
        %v998 = vmax.f32 %v996, %v941
        %v999 = vmax.f32 %v997, %v947
        %v1000 = vmax.f32 %v998, %v951
        %v1001 = vmax.f32 %v999, %v957
        %v1002 = vmax.f32 %v1000, %v961
        %v1003 = vmax.f32 %v1001, %v967
        %v1004 = vmax.f32 %v1002, %v971
        %v1005 = vmax.f32 %v1003, %v977
        %v1006 = vmax.f32 %v1004, %v981
        %v1007 = vmax.f32 %v1005, %v987
        %v1008 = vmax.f32 %v1006, %v991
        %v1009 = vmax.f32 %v1007, %v1008
        %v1010 = vrot.slane %v1009, 4
        %v1011 = vmax.f32 %v1009, %v1010
        %v1012 = vrot.slane %v1011, 2
        %v1013 = vmax.f32 %v1011, %v1012
        %v1014 = vrot.slane %v1013, 1
        %v1015 = vmax.f32 %v1013, %v1014
        %v1016 = vmax.f32 %v919, %v929
        %v1017 = vmax.f32 %v923, %v933
        %v1018 = vmax.f32 %v1016, %v939
        %v1019 = vmax.f32 %v1017, %v943
        %v1020 = vmax.f32 %v1018, %v949
        %v1021 = vmax.f32 %v1019, %v953
        %v1022 = vmax.f32 %v1020, %v959
        %v1023 = vmax.f32 %v1021, %v963
        %v1024 = vmax.f32 %v1022, %v969
        %v1025 = vmax.f32 %v1023, %v973
        %v1026 = vmax.f32 %v1024, %v979
        %v1027 = vmax.f32 %v1025, %v983
        %v1028 = vmax.f32 %v1026, %v989
        %v1029 = vmax.f32 %v1027, %v993
        %v1030 = vmax.f32 %v1028, %v1029
        %v1031 = vrot.slane %v1030, 4
        %v1032 = vmax.f32 %v1030, %v1031
        %v1033 = vrot.slane %v1032, 2
        %v1034 = vmax.f32 %v1032, %v1033
        %v1035 = vrot.slane %v1034, 1
        %v1036 = vmax.f32 %v1034, %v1035
        %v1037 = vsub.f32 -inf, %v1015
        %v1038 = vsub.f32 -inf, %v1036
        %v1039 = vmul.f32 %v1037, 1.442695
        %v1040 = vpow.pop %v1039
        %v1041 = vmul.f32 %v1038, 1.442695
        %v1042 = vpow.pop %v1041
        %v1043 = vsub.f32 %v917, %v1015
        %v1044 = vsub.f32 %v919, %v1036
        %v1045 = vsub.f32 %v921, %v1015
        %v1046 = vsub.f32 %v923, %v1036
        %v1047 = vsub.f32 %v927, %v1015
        %v1048 = vsub.f32 %v929, %v1036
        %v1049 = vsub.f32 %v931, %v1015
        %v1050 = vsub.f32 %v933, %v1036
        %v1051 = vsub.f32 %v937, %v1015
        %v1052 = vsub.f32 %v939, %v1036
        %v1053 = vsub.f32 %v941, %v1015
        %v1054 = vsub.f32 %v943, %v1036
        %v1055 = vsub.f32 %v947, %v1015
        %v1056 = vsub.f32 %v949, %v1036
        %v1057 = vsub.f32 %v951, %v1015
        %v1058 = vsub.f32 %v953, %v1036
        %v1059 = vsub.f32 %v957, %v1015
        %v1060 = vsub.f32 %v959, %v1036
        %v1061 = vsub.f32 %v961, %v1015
        %v1062 = vsub.f32 %v963, %v1036
        %v1063 = vsub.f32 %v967, %v1015
        %v1064 = vsub.f32 %v969, %v1036
        %v1065 = vsub.f32 %v971, %v1015
        %v1066 = vsub.f32 %v973, %v1036
        %v1067 = vsub.f32 %v977, %v1015
        %v1068 = vsub.f32 %v979, %v1036
        %v1069 = vsub.f32 %v981, %v1015
        %v1070 = vsub.f32 %v983, %v1036
        %v1071 = vsub.f32 %v987, %v1015
        %v1072 = vsub.f32 %v989, %v1036
        %v1073 = vsub.f32 %v991, %v1015
        %v1074 = vsub.f32 %v993, %v1036
        %v1075 = vmul.f32 %v1043, 1.442695
        %v1076 = vpow.pop %v1075
        %v1077 = vmul.f32 %v1044, 1.442695
        %v1078 = vpow.pop %v1077
        %v1079 = vmul.f32 %v1045, 1.442695
        %v1080 = vpow.pop %v1079
        %v1081 = vmul.f32 %v1046, 1.442695
        %v1082 = vpow.pop %v1081
        %v1083 = vmul.f32 %v1047, 1.442695
        %v1084 = vpow.pop %v1083
        %v1085 = vmul.f32 %v1048, 1.442695
        %v1086 = vpow.pop %v1085
        %v1087 = vmul.f32 %v1049, 1.442695
        %v1088 = vpow.pop %v1087
        %v1089 = vmul.f32 %v1050, 1.442695
        %v1090 = vpow.pop %v1089
        %v1091 = vmul.f32 %v1051, 1.442695
        %v1092 = vpow.pop %v1091
        %v1093 = vmul.f32 %v1052, 1.442695
        %v1094 = vpow.pop %v1093
        %v1095 = vmul.f32 %v1053, 1.442695
        %v1096 = vpow.pop %v1095
        %v1097 = vmul.f32 %v1054, 1.442695
        %v1098 = vpow.pop %v1097
        %v1099 = vmul.f32 %v1055, 1.442695
        %v1100 = vpow.pop %v1099
        %v1101 = vmul.f32 %v1056, 1.442695
        %v1102 = vpow.pop %v1101
        %v1103 = vmul.f32 %v1057, 1.442695
        %v1104 = vpow.pop %v1103
        %v1105 = vmul.f32 %v1058, 1.442695
        %v1106 = vpow.pop %v1105
        %v1107 = vmul.f32 %v1059, 1.442695
        %v1108 = vpow.pop %v1107
        %v1109 = vmul.f32 %v1060, 1.442695
        %v1110 = vpow.pop %v1109
        %v1111 = vmul.f32 %v1061, 1.442695
        %v1112 = vpow.pop %v1111
        %v1113 = vmul.f32 %v1062, 1.442695
        %v1114 = vpow.pop %v1113
        %v1115 = vmul.f32 %v1063, 1.442695
        %v1116 = vpow.pop %v1115
        %v1117 = vmul.f32 %v1064, 1.442695
        %v1118 = vpow.pop %v1117
        %v1119 = vmul.f32 %v1065, 1.442695
        %v1120 = vpow.pop %v1119
        %v1121 = vmul.f32 %v1066, 1.442695
        %v1122 = vpow.pop %v1121
        %v1123 = vmul.f32 %v1067, 1.442695
        %v1124 = vpow.pop %v1123
        %v1125 = vmul.f32 %v1068, 1.442695
        %v1126 = vpow.pop %v1125
        %v1127 = vmul.f32 %v1069, 1.442695
        %v1128 = vpow.pop %v1127
        %v1129 = vmul.f32 %v1070, 1.442695
        %v1130 = vpow.pop %v1129
        %v1131 = vmul.f32 %v1071, 1.442695
        %v1132 = vpow.pop %v1131
        %v1133 = vmul.f32 %v1072, 1.442695
        %v1134 = vpow.pop %v1133
        %v1135 = vmul.f32 %v1073, 1.442695
        %v1136 = vpow.pop %v1135
        %v1137 = vmul.f32 %v1074, 1.442695
        %v1138 = vpow.pop %v1137
        %v1139 = vmul.f32 %v1040, 0.0
        %v1140 = vmul.f32 %v1042, 0.0
        %v1141 = vadd.f32 %v1076, %v1080
        %v1142 = vadd.f32 %v1141, %v1084
        %v1143 = vadd.f32 %v1142, %v1088
        %v1144 = vadd.f32 %v1143, %v1092
        %v1145 = vadd.f32 %v1144, %v1096
        %v1146 = vadd.f32 %v1145, %v1100
        %v1147 = vadd.f32 %v1146, %v1104
        %v1148 = vadd.f32 %v1147, %v1108
        %v1149 = vadd.f32 %v1148, %v1112
        %v1150 = vadd.f32 %v1149, %v1116
        %v1151 = vadd.f32 %v1150, %v1120
        %v1152 = vadd.f32 %v1151, %v1124
        %v1153 = vadd.f32 %v1152, %v1128
        %v1154 = vadd.f32 %v1153, %v1132
        %v1155 = vadd.f32 %v1154, %v1136
        %v1156 = vrot.slane %v1155, 4
        %v1157 = vadd.f32 %v1155, %v1156
        %v1158 = vrot.slane %v1157, 2
        %v1159 = vadd.f32 %v1157, %v1158
        %v1160 = vrot.slane %v1159, 1
        %v1161 = vadd.f32 %v1159, %v1160
        %v1162 = vadd.f32 %v1078, %v1082
        %v1163 = vadd.f32 %v1162, %v1086
        %v1164 = vadd.f32 %v1163, %v1090
        %v1165 = vadd.f32 %v1164, %v1094
        %v1166 = vadd.f32 %v1165, %v1098
        %v1167 = vadd.f32 %v1166, %v1102
        %v1168 = vadd.f32 %v1167, %v1106
        %v1169 = vadd.f32 %v1168, %v1110
        %v1170 = vadd.f32 %v1169, %v1114
        %v1171 = vadd.f32 %v1170, %v1118
        %v1172 = vadd.f32 %v1171, %v1122
        %v1173 = vadd.f32 %v1172, %v1126
        %v1174 = vadd.f32 %v1173, %v1130
        %v1175 = vadd.f32 %v1174, %v1134
        %v1176 = vadd.f32 %v1175, %v1138
        %v1177 = vrot.slane %v1176, 4
        %v1178 = vadd.f32 %v1176, %v1177
        %v1179 = vrot.slane %v1178, 2
        %v1180 = vadd.f32 %v1178, %v1179
        %v1181 = vrot.slane %v1180, 1
        %v1182 = vadd.f32 %v1180, %v1181
        %v1183 = vadd.f32 %v1139, %v1161
        %v1184 = vadd.f32 %v1140, %v1182
        %v1185 = vpack.c.bf16 %v1080, %v1076
        %v1186 = vpack.c.bf16 %v1082, %v1078
        %v1187 = vpack.c.bf16 %v1088, %v1084
        %v1188 = vpack.c.bf16 %v1090, %v1086
        %v1189 = vpack.c.bf16 %v1096, %v1092
        %v1190 = vpack.c.bf16 %v1098, %v1094
        %v1191 = vpack.c.bf16 %v1104, %v1100
        %v1192 = vpack.c.bf16 %v1106, %v1102
        %v1193 = vpack.c.bf16 %v1112, %v1108
        %v1194 = vpack.c.bf16 %v1114, %v1110
        %v1195 = vpack.c.bf16 %v1120, %v1116
        %v1196 = vpack.c.bf16 %v1122, %v1118
        %v1197 = vpack.c.bf16 %v1128, %v1124
        %v1198 = vpack.c.bf16 %v1130, %v1126
        %v1199 = vpack.c.bf16 %v1136, %v1132
        %v1200 = vpack.c.bf16 %v1138, %v1134
        %1201 = vmatprep.subr.bf16.mxu0 %v1186
        %1202 = vmatpush1.bf16.msra.mxu0 %v1185
        %1203 = vmatprep.subr.bf16.mxu0 %v1188
        %1204 = vmatpush1.bf16.msra.mxu0 %v1187
        %1205 = vmatprep.subr.bf16.mxu0 %v1190
        %1206 = vmatpush1.bf16.msra.mxu0 %v1189
        %1207 = vmatprep.subr.bf16.mxu0 %v1192
        %1208 = vmatpush1.bf16.msra.mxu0 %v1191
        %1209 = vmatprep.subr.bf16.mxu0 %v1194
        %1210 = vmatpush1.bf16.msra.mxu0 %v1193
        %1211 = vmatprep.subr.bf16.mxu0 %v1196
        %1212 = vmatpush1.bf16.msra.mxu0 %v1195
        %1213 = vmatprep.subr.bf16.mxu0 %v1198
        %1214 = vmatpush1.bf16.msra.mxu0 %v1197
        %1215 = vmatprep.subr.bf16.mxu0 %v1200
        %1216 = vmatpush1.bf16.msra.mxu0 %v1199
        %1217 = vmatprep.subr.bf16.mxu0 0
        %1218 = vmatpush1.bf16.msra.mxu0 0
        %1219 = vmatprep.subr.bf16.mxu0 0
        %1220 = vmatpush1.bf16.msra.mxu0 0
        %1221 = vmatprep.subr.bf16.mxu0 0
        %1222 = vmatpush1.bf16.msra.mxu0 0
        %1223 = vmatprep.subr.bf16.mxu0 0
        %1224 = vmatpush1.bf16.msra.mxu0 0
        %1225 = vmatprep.subr.bf16.mxu0 0
        %1226 = vmatpush1.bf16.msra.mxu0 0
        %1227 = vmatprep.subr.bf16.mxu0 0
        %1228 = vmatpush1.bf16.msra.mxu0 0
        %1229 = vmatprep.subr.bf16.mxu0 0
        %1230 = vmatpush1.bf16.msra.mxu0 0
        %1231 = vmatprep.subr.bf16.mxu0 0
        %1232 = vmatpush1.bf16.msra.mxu0 0
        %1233 = vmatprep.mubr.bf16.mxu0 0
        %1234 = vmatmul.mubr.bf16.gmra.mrb[0].mxu0 %v835
        %v1235 = vpop.f32.mrb[0].mxu0
        %v1236 = vadd.f32 0.0, %v1235
        %v1237 = vpop.f32.mrb[0].mxu0
        %v1238 = vadd.f32 0.0, %v1237
        %v1239 = vpop.f32.mrb[0].mxu0
        %v1240 = vpop.f32.mrb[0].mxu0
        %1241 = vdwg.mxu0
        %v1242 = vadd.f32 %v1139, %v1236
        %v1243 = vadd.f32 %v1140, %v1238
        %s1244 = scalar_lea.vmem [#allocation2], 4
        %v1245 = vld [vmem:[%s1244] sm:$0xf]
        %s1246 = scalar_lea.vmem [#allocation3], 4
        %v1247 = vld [vmem:[%s1246] sm:$0xf]
        %1248 = vxpose.xlu0.c.b16.start [1/8] %v1245, 128
        %1249 = vxpose.xlu0.c.b16.cont [2/8] 0, 128
        %1250 = vxpose.xlu0.c.b16.cont [3/8] 0, 128
        %1251 = vxpose.xlu0.c.b16.cont [4/8] 0, 128
        %1252 = vxpose.xlu0.c.b16.cont [5/8] 0, 128
        %1253 = vxpose.xlu0.c.b16.cont [6/8] 0, 128
        %1254 = vxpose.xlu0.c.b16.cont [7/8] 0, 128
        %1255 = vxpose.xlu0.c.b16.end [8/8] 0, 128
        %v1256 = vpop.trf.xlu0
        %v1257 = vpop.trf.xlu0
        %v1258 = vpop.trf.xlu0
        %v1259 = vpop.trf.xlu0
        %v1260 = vpop.trf.xlu0
        %v1261 = vpop.trf.xlu0
        %v1262 = vpop.trf.xlu0
        %v1263 = vpop.trf.xlu0
        %v1265 = vsel %vm780, %v1256, 0
        %v1268 = vsel %vm780, %v1257, 0
        %v1271 = vsel %vm780, %v1258, 0
        %v1274 = vsel %vm780, %v1259, 0
        %v1277 = vsel %vm780, %v1260, 0
        %v1280 = vsel %vm780, %v1261, 0
        %v1283 = vsel %vm780, %v1262, 0
        %v1286 = vsel %vm780, %v1263, 0
        %1288 = vmatprep.subr.bf16.mxu0 %v880
        %1289 = vmatpush1.bf16.msra.mxu0 %v877
        %1290 = vmatprep.subr.bf16.mxu0 0
        %1291 = vmatpush1.bf16.msra.mxu0 0
        %1292 = vmatprep.subr.bf16.mxu0 0
        %1293 = vmatpush1.bf16.msra.mxu0 0
        %1294 = vmatprep.subr.bf16.mxu0 0
        %1295 = vmatpush1.bf16.msra.mxu0 0
        %1296 = vmatprep.subr.bf16.mxu0 0
        %1297 = vmatpush1.bf16.msra.mxu0 0
        %1298 = vmatprep.subr.bf16.mxu0 0
        %1299 = vmatpush1.bf16.msra.mxu0 0
        %1300 = vmatprep.subr.bf16.mxu0 0
        %1301 = vmatpush1.bf16.msra.mxu0 0
        %1302 = vmatprep.subr.bf16.mxu0 0
        %1303 = vmatpush1.bf16.msra.mxu0 0
        %1304 = vmatprep.subr.bf16.mxu0 0
        %1305 = vmatpush1.bf16.msra.mxu0 0
        %1306 = vmatprep.subr.bf16.mxu0 0
        %1307 = vmatpush1.bf16.msra.mxu0 0
        %1308 = vmatprep.subr.bf16.mxu0 0
        %1309 = vmatpush1.bf16.msra.mxu0 0
        %1310 = vmatprep.subr.bf16.mxu0 0
        %1311 = vmatpush1.bf16.msra.mxu0 0
        %1312 = vmatprep.subr.bf16.mxu0 0
        %1313 = vmatpush1.bf16.msra.mxu0 0
        %1314 = vmatprep.subr.bf16.mxu0 0
        %1315 = vmatpush1.bf16.msra.mxu0 0
        %1316 = vmatprep.subr.bf16.mxu0 0
        %1317 = vmatpush1.bf16.msra.mxu0 0
        %1318 = vmatprep.subr.bf16.mxu0 0
        %1319 = vmatpush1.bf16.msra.mxu0 0
        %1320 = vmatprep.mubr.bf16.mxu0 0
        %1321 = vmatmul.mubr.bf16.gmra.mrb[0].mxu0 %v1265
        %v1322 = vpop.f32.mrb[0].mxu0
        %v1323 = vadd.f32 0.0, %v1322
        %v1324 = vpop.f32.mrb[0].mxu0
        %v1325 = vadd.f32 0.0, %v1324
        %v1326 = vpop.f32.mrb[0].mxu0
        %v1327 = vadd.f32 0.0, %v1326
        %v1328 = vpop.f32.mrb[0].mxu0
        %v1329 = vadd.f32 0.0, %v1328
        %1330 = vmatprep.mubr.bf16.mxu0 0
        %1331 = vmatmul.mubr.bf16.gmra.mrb[0].mxu0 %v1268
        %v1332 = vpop.f32.mrb[0].mxu0
        %v1333 = vadd.f32 0.0, %v1332
        %v1334 = vpop.f32.mrb[0].mxu0
        %v1335 = vadd.f32 0.0, %v1334
        %v1336 = vpop.f32.mrb[0].mxu0
        %v1337 = vadd.f32 0.0, %v1336
        %v1338 = vpop.f32.mrb[0].mxu0
        %v1339 = vadd.f32 0.0, %v1338
        %1340 = vmatprep.mubr.bf16.mxu0 0
        %1341 = vmatmul.mubr.bf16.gmra.mrb[0].mxu0 %v1271
        %v1342 = vpop.f32.mrb[0].mxu0
        %v1343 = vadd.f32 0.0, %v1342
        %v1344 = vpop.f32.mrb[0].mxu0
        %v1345 = vadd.f32 0.0, %v1344
        %v1346 = vpop.f32.mrb[0].mxu0
        %v1347 = vadd.f32 0.0, %v1346
        %v1348 = vpop.f32.mrb[0].mxu0
        %v1349 = vadd.f32 0.0, %v1348
        %1350 = vmatprep.mubr.bf16.mxu0 0
        %1351 = vmatmul.mubr.bf16.gmra.mrb[0].mxu0 %v1274
        %v1352 = vpop.f32.mrb[0].mxu0
        %v1353 = vadd.f32 0.0, %v1352
        %v1354 = vpop.f32.mrb[0].mxu0
        %v1355 = vadd.f32 0.0, %v1354
        %v1356 = vpop.f32.mrb[0].mxu0
        %v1357 = vadd.f32 0.0, %v1356
        %v1358 = vpop.f32.mrb[0].mxu0
        %v1359 = vadd.f32 0.0, %v1358
        %1360 = vmatprep.mubr.bf16.mxu0 0
        %1361 = vmatmul.mubr.bf16.gmra.mrb[0].mxu0 %v1277
        %v1362 = vpop.f32.mrb[0].mxu0
        %v1363 = vadd.f32 0.0, %v1362
        %v1364 = vpop.f32.mrb[0].mxu0
        %v1365 = vadd.f32 0.0, %v1364
        %v1366 = vpop.f32.mrb[0].mxu0
        %v1367 = vadd.f32 0.0, %v1366
        %v1368 = vpop.f32.mrb[0].mxu0
        %v1369 = vadd.f32 0.0, %v1368
        %1370 = vmatprep.mubr.bf16.mxu0 0
        %1371 = vmatmul.mubr.bf16.gmra.mrb[0].mxu0 %v1280
        %v1372 = vpop.f32.mrb[0].mxu0
        %v1373 = vadd.f32 0.0, %v1372
        %v1374 = vpop.f32.mrb[0].mxu0
        %v1375 = vadd.f32 0.0, %v1374
        %v1376 = vpop.f32.mrb[0].mxu0
        %v1377 = vadd.f32 0.0, %v1376
        %v1378 = vpop.f32.mrb[0].mxu0
        %v1379 = vadd.f32 0.0, %v1378
        %1380 = vmatprep.mubr.bf16.mxu0 0
        %1381 = vmatmul.mubr.bf16.gmra.mrb[0].mxu0 %v1283
        %v1382 = vpop.f32.mrb[0].mxu0
        %v1383 = vadd.f32 0.0, %v1382
        %v1384 = vpop.f32.mrb[0].mxu0
        %v1385 = vadd.f32 0.0, %v1384
        %v1386 = vpop.f32.mrb[0].mxu0
        %v1387 = vadd.f32 0.0, %v1386
        %v1388 = vpop.f32.mrb[0].mxu0
        %v1389 = vadd.f32 0.0, %v1388
        %1390 = vmatprep.mubr.bf16.mxu0 0
        %1391 = vmatmul.mubr.bf16.gmra.mrb[0].mxu0 %v1286
        %v1392 = vpop.f32.mrb[0].mxu0
        %v1393 = vadd.f32 0.0, %v1392
        %v1394 = vpop.f32.mrb[0].mxu0
        %v1395 = vadd.f32 0.0, %v1394
        %v1396 = vpop.f32.mrb[0].mxu0
        %v1397 = vadd.f32 0.0, %v1396
        %v1398 = vpop.f32.mrb[0].mxu0
        %v1399 = vadd.f32 0.0, %v1398
        %1400 = vdwg.mxu0
        %v1401 = vmax.f32 %v1323, %v1333
        %v1402 = vmax.f32 %v1327, %v1337
        %v1403 = vmax.f32 %v1401, %v1343
        %v1404 = vmax.f32 %v1402, %v1347
        %v1405 = vmax.f32 %v1403, %v1353
        %v1406 = vmax.f32 %v1404, %v1357
        %v1407 = vmax.f32 %v1405, %v1363
        %v1408 = vmax.f32 %v1406, %v1367
        %v1409 = vmax.f32 %v1407, %v1373
        %v1410 = vmax.f32 %v1408, %v1377
        %v1411 = vmax.f32 %v1409, %v1383
        %v1412 = vmax.f32 %v1410, %v1387
        %v1413 = vmax.f32 %v1411, %v1393
        %v1414 = vmax.f32 %v1412, %v1397
        %v1415 = vmax.f32 %v1413, %v1414
        %v1416 = vrot.slane %v1415, 4
        %v1417 = vmax.f32 %v1415, %v1416
        %v1418 = vrot.slane %v1417, 2
        %v1419 = vmax.f32 %v1417, %v1418
        %v1420 = vrot.slane %v1419, 1
        %v1421 = vmax.f32 %v1419, %v1420
        %v1422 = vmax.f32 %v1325, %v1335
        %v1423 = vmax.f32 %v1329, %v1339
        %v1424 = vmax.f32 %v1422, %v1345
        %v1425 = vmax.f32 %v1423, %v1349
        %v1426 = vmax.f32 %v1424, %v1355
        %v1427 = vmax.f32 %v1425, %v1359
        %v1428 = vmax.f32 %v1426, %v1365
        %v1429 = vmax.f32 %v1427, %v1369
        %v1430 = vmax.f32 %v1428, %v1375
        %v1431 = vmax.f32 %v1429, %v1379
        %v1432 = vmax.f32 %v1430, %v1385
        %v1433 = vmax.f32 %v1431, %v1389
        %v1434 = vmax.f32 %v1432, %v1395
        %v1435 = vmax.f32 %v1433, %v1399
        %v1436 = vmax.f32 %v1434, %v1435
        %v1437 = vrot.slane %v1436, 4
        %v1438 = vmax.f32 %v1436, %v1437
        %v1439 = vrot.slane %v1438, 2
        %v1440 = vmax.f32 %v1438, %v1439
        %v1441 = vrot.slane %v1440, 1
        %v1442 = vmax.f32 %v1440, %v1441
        %v1443 = vmax.f32 %v1015, %v1421
        %v1444 = vmax.f32 %v1036, %v1442
        %v1445 = vsub.f32 %v1015, %v1443
        %v1446 = vsub.f32 %v1036, %v1444
        %v1447 = vmul.f32 %v1445, 1.442695
        %v1448 = vpow.pop %v1447
        %v1449 = vmul.f32 %v1446, 1.442695
        %v1450 = vpow.pop %v1449
        %v1451 = vsub.f32 %v1323, %v1443
        %v1452 = vsub.f32 %v1325, %v1444
        %v1453 = vsub.f32 %v1327, %v1443
        %v1454 = vsub.f32 %v1329, %v1444
        %v1455 = vsub.f32 %v1333, %v1443
        %v1456 = vsub.f32 %v1335, %v1444
        %v1457 = vsub.f32 %v1337, %v1443
        %v1458 = vsub.f32 %v1339, %v1444
        %v1459 = vsub.f32 %v1343, %v1443
        %v1460 = vsub.f32 %v1345, %v1444
        %v1461 = vsub.f32 %v1347, %v1443
        %v1462 = vsub.f32 %v1349, %v1444
        %v1463 = vsub.f32 %v1353, %v1443
        %v1464 = vsub.f32 %v1355, %v1444
        %v1465 = vsub.f32 %v1357, %v1443
        %v1466 = vsub.f32 %v1359, %v1444
        %v1467 = vsub.f32 %v1363, %v1443
        %v1468 = vsub.f32 %v1365, %v1444
        %v1469 = vsub.f32 %v1367, %v1443
        %v1470 = vsub.f32 %v1369, %v1444
        %v1471 = vsub.f32 %v1373, %v1443
        %v1472 = vsub.f32 %v1375, %v1444
        %v1473 = vsub.f32 %v1377, %v1443
        %v1474 = vsub.f32 %v1379, %v1444
        %v1475 = vsub.f32 %v1383, %v1443
        %v1476 = vsub.f32 %v1385, %v1444
        %v1477 = vsub.f32 %v1387, %v1443
        %v1478 = vsub.f32 %v1389, %v1444
        %v1479 = vsub.f32 %v1393, %v1443
        %v1480 = vsub.f32 %v1395, %v1444
        %v1481 = vsub.f32 %v1397, %v1443
        %v1482 = vsub.f32 %v1399, %v1444
        %v1483 = vmul.f32 %v1451, 1.442695
        %v1484 = vpow.pop %v1483
        %v1485 = vmul.f32 %v1452, 1.442695
        %v1486 = vpow.pop %v1485
        %v1487 = vmul.f32 %v1453, 1.442695
        %v1488 = vpow.pop %v1487
        %v1489 = vmul.f32 %v1454, 1.442695
        %v1490 = vpow.pop %v1489
        %v1491 = vmul.f32 %v1455, 1.442695
        %v1492 = vpow.pop %v1491
        %v1493 = vmul.f32 %v1456, 1.442695
        %v1494 = vpow.pop %v1493
        %v1495 = vmul.f32 %v1457, 1.442695
        %v1496 = vpow.pop %v1495
        %v1497 = vmul.f32 %v1458, 1.442695
        %v1498 = vpow.pop %v1497
        %v1499 = vmul.f32 %v1459, 1.442695
        %v1500 = vpow.pop %v1499
        %v1501 = vmul.f32 %v1460, 1.442695
        %v1502 = vpow.pop %v1501
        %v1503 = vmul.f32 %v1461, 1.442695
        %v1504 = vpow.pop %v1503
        %v1505 = vmul.f32 %v1462, 1.442695
        %v1506 = vpow.pop %v1505
        %v1507 = vmul.f32 %v1463, 1.442695
        %v1508 = vpow.pop %v1507
        %v1509 = vmul.f32 %v1464, 1.442695
        %v1510 = vpow.pop %v1509
        %v1511 = vmul.f32 %v1465, 1.442695
        %v1512 = vpow.pop %v1511
        %v1513 = vmul.f32 %v1466, 1.442695
        %v1514 = vpow.pop %v1513
        %v1515 = vmul.f32 %v1467, 1.442695
        %v1516 = vpow.pop %v1515
        %v1517 = vmul.f32 %v1468, 1.442695
        %v1518 = vpow.pop %v1517
        %v1519 = vmul.f32 %v1469, 1.442695
        %v1520 = vpow.pop %v1519
        %v1521 = vmul.f32 %v1470, 1.442695
        %v1522 = vpow.pop %v1521
        %v1523 = vmul.f32 %v1471, 1.442695
        %v1524 = vpow.pop %v1523
        %v1525 = vmul.f32 %v1472, 1.442695
        %v1526 = vpow.pop %v1525
        %v1527 = vmul.f32 %v1473, 1.442695
        %v1528 = vpow.pop %v1527
        %v1529 = vmul.f32 %v1474, 1.442695
        %v1530 = vpow.pop %v1529
        %v1531 = vmul.f32 %v1475, 1.442695
        %v1532 = vpow.pop %v1531
        %v1533 = vmul.f32 %v1476, 1.442695
        %v1534 = vpow.pop %v1533
        %v1535 = vmul.f32 %v1477, 1.442695
        %v1536 = vpow.pop %v1535
        %v1537 = vmul.f32 %v1478, 1.442695
        %v1538 = vpow.pop %v1537
        %v1539 = vmul.f32 %v1479, 1.442695
        %v1540 = vpow.pop %v1539
        %v1541 = vmul.f32 %v1480, 1.442695
        %v1542 = vpow.pop %v1541
        %v1543 = vmul.f32 %v1481, 1.442695
        %v1544 = vpow.pop %v1543
        %v1545 = vmul.f32 %v1482, 1.442695
        %v1546 = vpow.pop %v1545
        %v1547 = vmul.f32 %v1448, %v1183
        %v1548 = vmul.f32 %v1450, %v1184
        %v1549 = vadd.f32 %v1484, %v1488
        %v1550 = vadd.f32 %v1549, %v1492
        %v1551 = vadd.f32 %v1550, %v1496
        %v1552 = vadd.f32 %v1551, %v1500
        %v1553 = vadd.f32 %v1552, %v1504
        %v1554 = vadd.f32 %v1553, %v1508
        %v1555 = vadd.f32 %v1554, %v1512
        %v1556 = vadd.f32 %v1555, %v1516
        %v1557 = vadd.f32 %v1556, %v1520
        %v1558 = vadd.f32 %v1557, %v1524
        %v1559 = vadd.f32 %v1558, %v1528
        %v1560 = vadd.f32 %v1559, %v1532
        %v1561 = vadd.f32 %v1560, %v1536
        %v1562 = vadd.f32 %v1561, %v1540
        %v1563 = vadd.f32 %v1562, %v1544
        %v1564 = vrot.slane %v1563, 4
        %v1565 = vadd.f32 %v1563, %v1564
        %v1566 = vrot.slane %v1565, 2
        %v1567 = vadd.f32 %v1565, %v1566
        %v1568 = vrot.slane %v1567, 1
        %v1569 = vadd.f32 %v1567, %v1568
        %v1570 = vadd.f32 %v1486, %v1490
        %v1571 = vadd.f32 %v1570, %v1494
        %v1572 = vadd.f32 %v1571, %v1498
        %v1573 = vadd.f32 %v1572, %v1502
        %v1574 = vadd.f32 %v1573, %v1506
        %v1575 = vadd.f32 %v1574, %v1510
        %v1576 = vadd.f32 %v1575, %v1514
        %v1577 = vadd.f32 %v1576, %v1518
        %v1578 = vadd.f32 %v1577, %v1522
        %v1579 = vadd.f32 %v1578, %v1526
        %v1580 = vadd.f32 %v1579, %v1530
        %v1581 = vadd.f32 %v1580, %v1534
        %v1582 = vadd.f32 %v1581, %v1538
        %v1583 = vadd.f32 %v1582, %v1542
        %v1584 = vadd.f32 %v1583, %v1546
        %v1585 = vrot.slane %v1584, 4
        %v1586 = vadd.f32 %v1584, %v1585
        %v1587 = vrot.slane %v1586, 2
        %v1588 = vadd.f32 %v1586, %v1587
        %v1589 = vrot.slane %v1588, 1
        %v1590 = vadd.f32 %v1588, %v1589
        %v1591 = vadd.f32 %v1547, %v1569
        %v1592 = vadd.f32 %v1548, %v1590
        %v1593 = vpack.c.bf16 %v1488, %v1484
        %v1594 = vpack.c.bf16 %v1490, %v1486
        %v1595 = vpack.c.bf16 %v1496, %v1492
        %v1596 = vpack.c.bf16 %v1498, %v1494
        %v1597 = vpack.c.bf16 %v1504, %v1500
        %v1598 = vpack.c.bf16 %v1506, %v1502
        %v1599 = vpack.c.bf16 %v1512, %v1508
        %v1600 = vpack.c.bf16 %v1514, %v1510
        %v1601 = vpack.c.bf16 %v1520, %v1516
        %v1602 = vpack.c.bf16 %v1522, %v1518
        %v1603 = vpack.c.bf16 %v1528, %v1524
        %v1604 = vpack.c.bf16 %v1530, %v1526
        %v1605 = vpack.c.bf16 %v1536, %v1532
        %v1606 = vpack.c.bf16 %v1538, %v1534
        %v1607 = vpack.c.bf16 %v1544, %v1540
        %v1608 = vpack.c.bf16 %v1546, %v1542
        %1609 = vmatprep.subr.bf16.mxu0 %v1594
        %1610 = vmatpush1.bf16.msra.mxu0 %v1593
        %1611 = vmatprep.subr.bf16.mxu0 %v1596
        %1612 = vmatpush1.bf16.msra.mxu0 %v1595
        %1613 = vmatprep.subr.bf16.mxu0 %v1598
        %1614 = vmatpush1.bf16.msra.mxu0 %v1597
        %1615 = vmatprep.subr.bf16.mxu0 %v1600
        %1616 = vmatpush1.bf16.msra.mxu0 %v1599
        %1617 = vmatprep.subr.bf16.mxu0 %v1602
        %1618 = vmatpush1.bf16.msra.mxu0 %v1601
        %1619 = vmatprep.subr.bf16.mxu0 %v1604
        %1620 = vmatpush1.bf16.msra.mxu0 %v1603
        %1621 = vmatprep.subr.bf16.mxu0 %v1606
        %1622 = vmatpush1.bf16.msra.mxu0 %v1605
        %1623 = vmatprep.subr.bf16.mxu0 %v1608
        %1624 = vmatpush1.bf16.msra.mxu0 %v1607
        %1625 = vmatprep.subr.bf16.mxu0 0
        %1626 = vmatpush1.bf16.msra.mxu0 0
        %1627 = vmatprep.subr.bf16.mxu0 0
        %1628 = vmatpush1.bf16.msra.mxu0 0
        %1629 = vmatprep.subr.bf16.mxu0 0
        %1630 = vmatpush1.bf16.msra.mxu0 0
        %1631 = vmatprep.subr.bf16.mxu0 0
        %1632 = vmatpush1.bf16.msra.mxu0 0
        %1633 = vmatprep.subr.bf16.mxu0 0
        %1634 = vmatpush1.bf16.msra.mxu0 0
        %1635 = vmatprep.subr.bf16.mxu0 0
        %1636 = vmatpush1.bf16.msra.mxu0 0
        %1637 = vmatprep.subr.bf16.mxu0 0
        %1638 = vmatpush1.bf16.msra.mxu0 0
        %1639 = vmatprep.subr.bf16.mxu0 0
        %1640 = vmatpush1.bf16.msra.mxu0 0
        %1641 = vmatprep.mubr.bf16.mxu0 0
        %1642 = vmatmul.mubr.bf16.gmra.mrb[0].mxu0 %v1247
        %v1643 = vpop.f32.mrb[0].mxu0
        %v1644 = vadd.f32 0.0, %v1643
        %v1645 = vpop.f32.mrb[0].mxu0
        %v1646 = vadd.f32 0.0, %v1645
        %v1647 = vpop.f32.mrb[0].mxu0
        %v1648 = vpop.f32.mrb[0].mxu0
        %1649 = vdwg.mxu0
        %v1650 = vmul.f32 %v1448, %v1242
        %v1651 = vmul.f32 %v1450, %v1243
        %v1652 = vadd.f32 %v1650, %v1644
        %v1653 = vadd.f32 %v1651, %v1646
        %s1654 = scalar_lea.vmem [#allocation2], 8
        %v1655 = vld [vmem:[%s1654] sm:$0xf]
        %s1656 = scalar_lea.vmem [#allocation3], 8
        %v1657 = vld [vmem:[%s1656] sm:$0xf]
        %1658 = vxpose.xlu0.c.b16.start [1/8] %v1655, 128
        %1659 = vxpose.xlu0.c.b16.cont [2/8] 0, 128
        %1660 = vxpose.xlu0.c.b16.cont [3/8] 0, 128
        %1661 = vxpose.xlu0.c.b16.cont [4/8] 0, 128
        %1662 = vxpose.xlu0.c.b16.cont [5/8] 0, 128
        %1663 = vxpose.xlu0.c.b16.cont [6/8] 0, 128
        %1664 = vxpose.xlu0.c.b16.cont [7/8] 0, 128
        %1665 = vxpose.xlu0.c.b16.end [8/8] 0, 128
        %v1666 = vpop.trf.xlu0
        %v1667 = vpop.trf.xlu0
        %v1668 = vpop.trf.xlu0
        %v1669 = vpop.trf.xlu0
        %v1670 = vpop.trf.xlu0
        %v1671 = vpop.trf.xlu0
        %v1672 = vpop.trf.xlu0
        %v1673 = vpop.trf.xlu0
        %v1675 = vsel %vm780, %v1666, 0
        %v1678 = vsel %vm780, %v1667, 0
        %v1681 = vsel %vm780, %v1668, 0
        %v1684 = vsel %vm780, %v1669, 0
        %v1687 = vsel %vm780, %v1670, 0
        %v1690 = vsel %vm780, %v1671, 0
        %v1693 = vsel %vm780, %v1672, 0
        %v1696 = vsel %vm780, %v1673, 0
        %1698 = vmatprep.subr.bf16.mxu0 %v880
        %1699 = vmatpush1.bf16.msra.mxu0 %v877
        %1700 = vmatprep.subr.bf16.mxu0 0
        %1701 = vmatpush1.bf16.msra.mxu0 0
        %1702 = vmatprep.subr.bf16.mxu0 0
        %1703 = vmatpush1.bf16.msra.mxu0 0
        %1704 = vmatprep.subr.bf16.mxu0 0
        %1705 = vmatpush1.bf16.msra.mxu0 0
        %1706 = vmatprep.subr.bf16.mxu0 0
        %1707 = vmatpush1.bf16.msra.mxu0 0
        %1708 = vmatprep.subr.bf16.mxu0 0
        %1709 = vmatpush1.bf16.msra.mxu0 0
        %1710 = vmatprep.subr.bf16.mxu0 0
        %1711 = vmatpush1.bf16.msra.mxu0 0
        %1712 = vmatprep.subr.bf16.mxu0 0
        %1713 = vmatpush1.bf16.msra.mxu0 0
        %1714 = vmatprep.subr.bf16.mxu0 0
        %1715 = vmatpush1.bf16.msra.mxu0 0
        %1716 = vmatprep.subr.bf16.mxu0 0
        %1717 = vmatpush1.bf16.msra.mxu0 0
        %1718 = vmatprep.subr.bf16.mxu0 0
        %1719 = vmatpush1.bf16.msra.mxu0 0
        %1720 = vmatprep.subr.bf16.mxu0 0
        %1721 = vmatpush1.bf16.msra.mxu0 0
        %1722 = vmatprep.subr.bf16.mxu0 0
        %1723 = vmatpush1.bf16.msra.mxu0 0
        %1724 = vmatprep.subr.bf16.mxu0 0
        %1725 = vmatpush1.bf16.msra.mxu0 0
        %1726 = vmatprep.subr.bf16.mxu0 0
        %1727 = vmatpush1.bf16.msra.mxu0 0
        %1728 = vmatprep.subr.bf16.mxu0 0
        %1729 = vmatpush1.bf16.msra.mxu0 0
        %1730 = vmatprep.mubr.bf16.mxu0 0
        %1731 = vmatmul.mubr.bf16.gmra.mrb[0].mxu0 %v1675
        %v1732 = vpop.f32.mrb[0].mxu0
        %v1733 = vadd.f32 0.0, %v1732
        %v1734 = vpop.f32.mrb[0].mxu0
        %v1735 = vadd.f32 0.0, %v1734
        %v1736 = vpop.f32.mrb[0].mxu0
        %v1737 = vadd.f32 0.0, %v1736
        %v1738 = vpop.f32.mrb[0].mxu0
        %v1739 = vadd.f32 0.0, %v1738
        %1740 = vmatprep.mubr.bf16.mxu0 0
        %1741 = vmatmul.mubr.bf16.gmra.mrb[0].mxu0 %v1678
        %v1742 = vpop.f32.mrb[0].mxu0
        %v1743 = vadd.f32 0.0, %v1742
        %v1744 = vpop.f32.mrb[0].mxu0
        %v1745 = vadd.f32 0.0, %v1744
        %v1746 = vpop.f32.mrb[0].mxu0
        %v1747 = vadd.f32 0.0, %v1746
        %v1748 = vpop.f32.mrb[0].mxu0
        %v1749 = vadd.f32 0.0, %v1748
        %1750 = vmatprep.mubr.bf16.mxu0 0
        %1751 = vmatmul.mubr.bf16.gmra.mrb[0].mxu0 %v1681
        %v1752 = vpop.f32.mrb[0].mxu0
        %v1753 = vadd.f32 0.0, %v1752
        %v1754 = vpop.f32.mrb[0].mxu0
        %v1755 = vadd.f32 0.0, %v1754
        %v1756 = vpop.f32.mrb[0].mxu0
        %v1757 = vadd.f32 0.0, %v1756
        %v1758 = vpop.f32.mrb[0].mxu0
        %v1759 = vadd.f32 0.0, %v1758
        %1760 = vmatprep.mubr.bf16.mxu0 0
        %1761 = vmatmul.mubr.bf16.gmra.mrb[0].mxu0 %v1684
        %v1762 = vpop.f32.mrb[0].mxu0
        %v1763 = vadd.f32 0.0, %v1762
        %v1764 = vpop.f32.mrb[0].mxu0
        %v1765 = vadd.f32 0.0, %v1764
        %v1766 = vpop.f32.mrb[0].mxu0
        %v1767 = vadd.f32 0.0, %v1766
        %v1768 = vpop.f32.mrb[0].mxu0
        %v1769 = vadd.f32 0.0, %v1768
        %1770 = vmatprep.mubr.bf16.mxu0 0
        %1771 = vmatmul.mubr.bf16.gmra.mrb[0].mxu0 %v1687
        %v1772 = vpop.f32.mrb[0].mxu0
        %v1773 = vadd.f32 0.0, %v1772
        %v1774 = vpop.f32.mrb[0].mxu0
        %v1775 = vadd.f32 0.0, %v1774
        %v1776 = vpop.f32.mrb[0].mxu0
        %v1777 = vadd.f32 0.0, %v1776
        %v1778 = vpop.f32.mrb[0].mxu0
        %v1779 = vadd.f32 0.0, %v1778
        %1780 = vmatprep.mubr.bf16.mxu0 0
        %1781 = vmatmul.mubr.bf16.gmra.mrb[0].mxu0 %v1690
        %v1782 = vpop.f32.mrb[0].mxu0
        %v1783 = vadd.f32 0.0, %v1782
        %v1784 = vpop.f32.mrb[0].mxu0
        %v1785 = vadd.f32 0.0, %v1784
        %v1786 = vpop.f32.mrb[0].mxu0
        %v1787 = vadd.f32 0.0, %v1786
        %v1788 = vpop.f32.mrb[0].mxu0
        %v1789 = vadd.f32 0.0, %v1788
        %1790 = vmatprep.mubr.bf16.mxu0 0
        %1791 = vmatmul.mubr.bf16.gmra.mrb[0].mxu0 %v1693
        %v1792 = vpop.f32.mrb[0].mxu0
        %v1793 = vadd.f32 0.0, %v1792
        %v1794 = vpop.f32.mrb[0].mxu0
        %v1795 = vadd.f32 0.0, %v1794
        %v1796 = vpop.f32.mrb[0].mxu0
        %v1797 = vadd.f32 0.0, %v1796
        %v1798 = vpop.f32.mrb[0].mxu0
        %v1799 = vadd.f32 0.0, %v1798
        %1800 = vmatprep.mubr.bf16.mxu0 0
        %1801 = vmatmul.mubr.bf16.gmra.mrb[0].mxu0 %v1696
        %v1802 = vpop.f32.mrb[0].mxu0
        %v1803 = vadd.f32 0.0, %v1802
        %v1804 = vpop.f32.mrb[0].mxu0
        %v1805 = vadd.f32 0.0, %v1804
        %v1806 = vpop.f32.mrb[0].mxu0
        %v1807 = vadd.f32 0.0, %v1806
        %v1808 = vpop.f32.mrb[0].mxu0
        %v1809 = vadd.f32 0.0, %v1808
        %1810 = vdwg.mxu0
        %v1811 = vmax.f32 %v1733, %v1743
        %v1812 = vmax.f32 %v1737, %v1747
        %v1813 = vmax.f32 %v1811, %v1753
        %v1814 = vmax.f32 %v1812, %v1757
        %v1815 = vmax.f32 %v1813, %v1763
        %v1816 = vmax.f32 %v1814, %v1767
        %v1817 = vmax.f32 %v1815, %v1773
        %v1818 = vmax.f32 %v1816, %v1777
        %v1819 = vmax.f32 %v1817, %v1783
        %v1820 = vmax.f32 %v1818, %v1787
        %v1821 = vmax.f32 %v1819, %v1793
        %v1822 = vmax.f32 %v1820, %v1797
        %v1823 = vmax.f32 %v1821, %v1803
        %v1824 = vmax.f32 %v1822, %v1807
        %v1825 = vmax.f32 %v1823, %v1824
        %v1826 = vrot.slane %v1825, 4
        %v1827 = vmax.f32 %v1825, %v1826
        %v1828 = vrot.slane %v1827, 2
        %v1829 = vmax.f32 %v1827, %v1828
        %v1830 = vrot.slane %v1829, 1
        %v1831 = vmax.f32 %v1829, %v1830
        %v1832 = vmax.f32 %v1735, %v1745
        %v1833 = vmax.f32 %v1739, %v1749
        %v1834 = vmax.f32 %v1832, %v1755
        %v1835 = vmax.f32 %v1833, %v1759
        %v1836 = vmax.f32 %v1834, %v1765
        %v1837 = vmax.f32 %v1835, %v1769
        %v1838 = vmax.f32 %v1836, %v1775
        %v1839 = vmax.f32 %v1837, %v1779
        %v1840 = vmax.f32 %v1838, %v1785
        %v1841 = vmax.f32 %v1839, %v1789
        %v1842 = vmax.f32 %v1840, %v1795
        %v1843 = vmax.f32 %v1841, %v1799
        %v1844 = vmax.f32 %v1842, %v1805
        %v1845 = vmax.f32 %v1843, %v1809
        %v1846 = vmax.f32 %v1844, %v1845
        %v1847 = vrot.slane %v1846, 4
        %v1848 = vmax.f32 %v1846, %v1847
        %v1849 = vrot.slane %v1848, 2
        %v1850 = vmax.f32 %v1848, %v1849
        %v1851 = vrot.slane %v1850, 1
        %v1852 = vmax.f32 %v1850, %v1851
        %v1853 = vmax.f32 %v1443, %v1831
        %v1854 = vmax.f32 %v1444, %v1852
        %v1855 = vsub.f32 %v1443, %v1853
        %v1856 = vsub.f32 %v1444, %v1854
        %v1857 = vmul.f32 %v1855, 1.442695
        %v1858 = vpow.pop %v1857
        %v1859 = vmul.f32 %v1856, 1.442695
        %v1860 = vpow.pop %v1859
        %v1861 = vsub.f32 %v1733, %v1853
        %v1862 = vsub.f32 %v1735, %v1854
        %v1863 = vsub.f32 %v1737, %v1853
        %v1864 = vsub.f32 %v1739, %v1854
        %v1865 = vsub.f32 %v1743, %v1853
        %v1866 = vsub.f32 %v1745, %v1854
        %v1867 = vsub.f32 %v1747, %v1853
        %v1868 = vsub.f32 %v1749, %v1854
        %v1869 = vsub.f32 %v1753, %v1853
        %v1870 = vsub.f32 %v1755, %v1854
        %v1871 = vsub.f32 %v1757, %v1853
        %v1872 = vsub.f32 %v1759, %v1854
        %v1873 = vsub.f32 %v1763, %v1853
        %v1874 = vsub.f32 %v1765, %v1854
        %v1875 = vsub.f32 %v1767, %v1853
        %v1876 = vsub.f32 %v1769, %v1854
        %v1877 = vsub.f32 %v1773, %v1853
        %v1878 = vsub.f32 %v1775, %v1854
        %v1879 = vsub.f32 %v1777, %v1853
        %v1880 = vsub.f32 %v1779, %v1854
        %v1881 = vsub.f32 %v1783, %v1853
        %v1882 = vsub.f32 %v1785, %v1854
        %v1883 = vsub.f32 %v1787, %v1853
        %v1884 = vsub.f32 %v1789, %v1854
        %v1885 = vsub.f32 %v1793, %v1853
        %v1886 = vsub.f32 %v1795, %v1854
        %v1887 = vsub.f32 %v1797, %v1853
        %v1888 = vsub.f32 %v1799, %v1854
        %v1889 = vsub.f32 %v1803, %v1853
        %v1890 = vsub.f32 %v1805, %v1854
        %v1891 = vsub.f32 %v1807, %v1853
        %v1892 = vsub.f32 %v1809, %v1854
        %v1893 = vmul.f32 %v1861, 1.442695
        %v1894 = vpow.pop %v1893
        %v1895 = vmul.f32 %v1862, 1.442695
        %v1896 = vpow.pop %v1895
        %v1897 = vmul.f32 %v1863, 1.442695
        %v1898 = vpow.pop %v1897
        %v1899 = vmul.f32 %v1864, 1.442695
        %v1900 = vpow.pop %v1899
        %v1901 = vmul.f32 %v1865, 1.442695
        %v1902 = vpow.pop %v1901
        %v1903 = vmul.f32 %v1866, 1.442695
        %v1904 = vpow.pop %v1903
        %v1905 = vmul.f32 %v1867, 1.442695
        %v1906 = vpow.pop %v1905
        %v1907 = vmul.f32 %v1868, 1.442695
        %v1908 = vpow.pop %v1907
        %v1909 = vmul.f32 %v1869, 1.442695
        %v1910 = vpow.pop %v1909
        %v1911 = vmul.f32 %v1870, 1.442695
        %v1912 = vpow.pop %v1911
        %v1913 = vmul.f32 %v1871, 1.442695
        %v1914 = vpow.pop %v1913
        %v1915 = vmul.f32 %v1872, 1.442695
        %v1916 = vpow.pop %v1915
        %v1917 = vmul.f32 %v1873, 1.442695
        %v1918 = vpow.pop %v1917
        %v1919 = vmul.f32 %v1874, 1.442695
        %v1920 = vpow.pop %v1919
        %v1921 = vmul.f32 %v1875, 1.442695
        %v1922 = vpow.pop %v1921
        %v1923 = vmul.f32 %v1876, 1.442695
        %v1924 = vpow.pop %v1923
        %v1925 = vmul.f32 %v1877, 1.442695
        %v1926 = vpow.pop %v1925
        %v1927 = vmul.f32 %v1878, 1.442695
        %v1928 = vpow.pop %v1927
        %v1929 = vmul.f32 %v1879, 1.442695
        %v1930 = vpow.pop %v1929
        %v1931 = vmul.f32 %v1880, 1.442695
        %v1932 = vpow.pop %v1931
        %v1933 = vmul.f32 %v1881, 1.442695
        %v1934 = vpow.pop %v1933
        %v1935 = vmul.f32 %v1882, 1.442695
        %v1936 = vpow.pop %v1935
        %v1937 = vmul.f32 %v1883, 1.442695
        %v1938 = vpow.pop %v1937
        %v1939 = vmul.f32 %v1884, 1.442695
        %v1940 = vpow.pop %v1939
        %v1941 = vmul.f32 %v1885, 1.442695
        %v1942 = vpow.pop %v1941
        %v1943 = vmul.f32 %v1886, 1.442695
        %v1944 = vpow.pop %v1943
        %v1945 = vmul.f32 %v1887, 1.442695
        %v1946 = vpow.pop %v1945
        %v1947 = vmul.f32 %v1888, 1.442695
        %v1948 = vpow.pop %v1947
        %v1949 = vmul.f32 %v1889, 1.442695
        %v1950 = vpow.pop %v1949
        %v1951 = vmul.f32 %v1890, 1.442695
        %v1952 = vpow.pop %v1951
        %v1953 = vmul.f32 %v1891, 1.442695
        %v1954 = vpow.pop %v1953
        %v1955 = vmul.f32 %v1892, 1.442695
        %v1956 = vpow.pop %v1955
        %v1957 = vmul.f32 %v1858, %v1591
        %v1958 = vmul.f32 %v1860, %v1592
        %v1959 = vadd.f32 %v1894, %v1898
        %v1960 = vadd.f32 %v1959, %v1902
        %v1961 = vadd.f32 %v1960, %v1906
        %v1962 = vadd.f32 %v1961, %v1910
        %v1963 = vadd.f32 %v1962, %v1914
        %v1964 = vadd.f32 %v1963, %v1918
        %v1965 = vadd.f32 %v1964, %v1922
        %v1966 = vadd.f32 %v1965, %v1926
        %v1967 = vadd.f32 %v1966, %v1930
        %v1968 = vadd.f32 %v1967, %v1934
        %v1969 = vadd.f32 %v1968, %v1938
        %v1970 = vadd.f32 %v1969, %v1942
        %v1971 = vadd.f32 %v1970, %v1946
        %v1972 = vadd.f32 %v1971, %v1950
        %v1973 = vadd.f32 %v1972, %v1954
        %v1974 = vrot.slane %v1973, 4
        %v1975 = vadd.f32 %v1973, %v1974
        %v1976 = vrot.slane %v1975, 2
        %v1977 = vadd.f32 %v1975, %v1976
        %v1978 = vrot.slane %v1977, 1
        %v1979 = vadd.f32 %v1977, %v1978
        %v1980 = vadd.f32 %v1896, %v1900
        %v1981 = vadd.f32 %v1980, %v1904
        %v1982 = vadd.f32 %v1981, %v1908
        %v1983 = vadd.f32 %v1982, %v1912
        %v1984 = vadd.f32 %v1983, %v1916
        %v1985 = vadd.f32 %v1984, %v1920
        %v1986 = vadd.f32 %v1985, %v1924
        %v1987 = vadd.f32 %v1986, %v1928
        %v1988 = vadd.f32 %v1987, %v1932
        %v1989 = vadd.f32 %v1988, %v1936
        %v1990 = vadd.f32 %v1989, %v1940
        %v1991 = vadd.f32 %v1990, %v1944
        %v1992 = vadd.f32 %v1991, %v1948
        %v1993 = vadd.f32 %v1992, %v1952
        %v1994 = vadd.f32 %v1993, %v1956
        %v1995 = vrot.slane %v1994, 4
        %v1996 = vadd.f32 %v1994, %v1995
        %v1997 = vrot.slane %v1996, 2
        %v1998 = vadd.f32 %v1996, %v1997
        %v1999 = vrot.slane %v1998, 1
        %v2000 = vadd.f32 %v1998, %v1999
        %v2001 = vadd.f32 %v1957, %v1979
        %v2002 = vadd.f32 %v1958, %v2000
        %v2003 = vpack.c.bf16 %v1898, %v1894
        %v2004 = vpack.c.bf16 %v1900, %v1896
        %v2005 = vpack.c.bf16 %v1906, %v1902
        %v2006 = vpack.c.bf16 %v1908, %v1904
        %v2007 = vpack.c.bf16 %v1914, %v1910
        %v2008 = vpack.c.bf16 %v1916, %v1912
        %v2009 = vpack.c.bf16 %v1922, %v1918
        %v2010 = vpack.c.bf16 %v1924, %v1920
        %v2011 = vpack.c.bf16 %v1930, %v1926
        %v2012 = vpack.c.bf16 %v1932, %v1928
        %v2013 = vpack.c.bf16 %v1938, %v1934
        %v2014 = vpack.c.bf16 %v1940, %v1936
        %v2015 = vpack.c.bf16 %v1946, %v1942
        %v2016 = vpack.c.bf16 %v1948, %v1944
        %v2017 = vpack.c.bf16 %v1954, %v1950
        %v2018 = vpack.c.bf16 %v1956, %v1952
        %2019 = vmatprep.subr.bf16.mxu0 %v2004
        %2020 = vmatpush1.bf16.msra.mxu0 %v2003
        %2021 = vmatprep.subr.bf16.mxu0 %v2006
        %2022 = vmatpush1.bf16.msra.mxu0 %v2005
        %2023 = vmatprep.subr.bf16.mxu0 %v2008
        %2024 = vmatpush1.bf16.msra.mxu0 %v2007
        %2025 = vmatprep.subr.bf16.mxu0 %v2010
        %2026 = vmatpush1.bf16.msra.mxu0 %v2009
        %2027 = vmatprep.subr.bf16.mxu0 %v2012
        %2028 = vmatpush1.bf16.msra.mxu0 %v2011
        %2029 = vmatprep.subr.bf16.mxu0 %v2014
        %2030 = vmatpush1.bf16.msra.mxu0 %v2013
        %2031 = vmatprep.subr.bf16.mxu0 %v2016
        %2032 = vmatpush1.bf16.msra.mxu0 %v2015
        %2033 = vmatprep.subr.bf16.mxu0 %v2018
        %2034 = vmatpush1.bf16.msra.mxu0 %v2017
        %2035 = vmatprep.subr.bf16.mxu0 0
        %2036 = vmatpush1.bf16.msra.mxu0 0
        %2037 = vmatprep.subr.bf16.mxu0 0
        %2038 = vmatpush1.bf16.msra.mxu0 0
        %2039 = vmatprep.subr.bf16.mxu0 0
        %2040 = vmatpush1.bf16.msra.mxu0 0
        %2041 = vmatprep.subr.bf16.mxu0 0
        %2042 = vmatpush1.bf16.msra.mxu0 0
        %2043 = vmatprep.subr.bf16.mxu0 0
        %2044 = vmatpush1.bf16.msra.mxu0 0
        %2045 = vmatprep.subr.bf16.mxu0 0
        %2046 = vmatpush1.bf16.msra.mxu0 0
        %2047 = vmatprep.subr.bf16.mxu0 0
        %2048 = vmatpush1.bf16.msra.mxu0 0
        %2049 = vmatprep.subr.bf16.mxu0 0
        %2050 = vmatpush1.bf16.msra.mxu0 0
        %2051 = vmatprep.mubr.bf16.mxu0 0
        %2052 = vmatmul.mubr.bf16.gmra.mrb[0].mxu0 %v1657
        %v2053 = vpop.f32.mrb[0].mxu0
        %v2054 = vadd.f32 0.0, %v2053
        %v2055 = vpop.f32.mrb[0].mxu0
        %v2056 = vadd.f32 0.0, %v2055
        %v2057 = vpop.f32.mrb[0].mxu0
        %v2058 = vpop.f32.mrb[0].mxu0
        %2059 = vdwg.mxu0
        %v2060 = vmul.f32 %v1858, %v1652
        %v2061 = vmul.f32 %v1860, %v1653
        %v2062 = vadd.f32 %v2060, %v2054
        %v2063 = vadd.f32 %v2061, %v2056
        %s2064 = scalar_lea.vmem [#allocation2], 12
        %v2065 = vld [vmem:[%s2064] sm:$0xf]
        %s2066 = scalar_lea.vmem [#allocation3], 12
        %v2067 = vld [vmem:[%s2066] sm:$0xf]
        %2068 = vxpose.xlu0.c.b16.start [1/8] %v2065, 128
        %2069 = vxpose.xlu0.c.b16.cont [2/8] 0, 128
        %2070 = vxpose.xlu0.c.b16.cont [3/8] 0, 128
        %2071 = vxpose.xlu0.c.b16.cont [4/8] 0, 128
        %2072 = vxpose.xlu0.c.b16.cont [5/8] 0, 128
        %2073 = vxpose.xlu0.c.b16.cont [6/8] 0, 128
        %2074 = vxpose.xlu0.c.b16.cont [7/8] 0, 128
        %2075 = vxpose.xlu0.c.b16.end [8/8] 0, 128
        %v2076 = vpop.trf.xlu0
        %v2077 = vpop.trf.xlu0
        %v2078 = vpop.trf.xlu0
        %v2079 = vpop.trf.xlu0
        %v2080 = vpop.trf.xlu0
        %v2081 = vpop.trf.xlu0
        %v2082 = vpop.trf.xlu0
        %v2083 = vpop.trf.xlu0
        %v2085 = vsel %vm780, %v2076, 0
        %v2088 = vsel %vm780, %v2077, 0
        %v2091 = vsel %vm780, %v2078, 0
        %v2094 = vsel %vm780, %v2079, 0
        %v2097 = vsel %vm780, %v2080, 0
        %v2100 = vsel %vm780, %v2081, 0
        %v2103 = vsel %vm780, %v2082, 0
        %v2106 = vsel %vm780, %v2083, 0
        %2108 = vmatprep.subr.bf16.mxu0 %v880
        %2109 = vmatpush1.bf16.msra.mxu0 %v877
        %2110 = vmatprep.subr.bf16.mxu0 0
        %2111 = vmatpush1.bf16.msra.mxu0 0
        %2112 = vmatprep.subr.bf16.mxu0 0
        %2113 = vmatpush1.bf16.msra.mxu0 0
        %2114 = vmatprep.subr.bf16.mxu0 0
        %2115 = vmatpush1.bf16.msra.mxu0 0
        %2116 = vmatprep.subr.bf16.mxu0 0
        %2117 = vmatpush1.bf16.msra.mxu0 0
        %2118 = vmatprep.subr.bf16.mxu0 0
        %2119 = vmatpush1.bf16.msra.mxu0 0
        %2120 = vmatprep.subr.bf16.mxu0 0
        %2121 = vmatpush1.bf16.msra.mxu0 0
        %2122 = vmatprep.subr.bf16.mxu0 0
        %2123 = vmatpush1.bf16.msra.mxu0 0
        %2124 = vmatprep.subr.bf16.mxu0 0
        %2125 = vmatpush1.bf16.msra.mxu0 0
        %2126 = vmatprep.subr.bf16.mxu0 0
        %2127 = vmatpush1.bf16.msra.mxu0 0
        %2128 = vmatprep.subr.bf16.mxu0 0
        %2129 = vmatpush1.bf16.msra.mxu0 0
        %2130 = vmatprep.subr.bf16.mxu0 0
        %2131 = vmatpush1.bf16.msra.mxu0 0
        %2132 = vmatprep.subr.bf16.mxu0 0
        %2133 = vmatpush1.bf16.msra.mxu0 0
        %2134 = vmatprep.subr.bf16.mxu0 0
        %2135 = vmatpush1.bf16.msra.mxu0 0
        %2136 = vmatprep.subr.bf16.mxu0 0
        %2137 = vmatpush1.bf16.msra.mxu0 0
        %2138 = vmatprep.subr.bf16.mxu0 0
        %2139 = vmatpush1.bf16.msra.mxu0 0
        %2140 = vmatprep.mubr.bf16.mxu0 0
        %2141 = vmatmul.mubr.bf16.gmra.mrb[0].mxu0 %v2085
        %v2142 = vpop.f32.mrb[0].mxu0
        %v2143 = vadd.f32 0.0, %v2142
        %v2144 = vpop.f32.mrb[0].mxu0
        %v2145 = vadd.f32 0.0, %v2144
        %v2146 = vpop.f32.mrb[0].mxu0
        %v2147 = vadd.f32 0.0, %v2146
        %v2148 = vpop.f32.mrb[0].mxu0
        %v2149 = vadd.f32 0.0, %v2148
        %2150 = vmatprep.mubr.bf16.mxu0 0
        %2151 = vmatmul.mubr.bf16.gmra.mrb[0].mxu0 %v2088
        %v2152 = vpop.f32.mrb[0].mxu0
        %v2153 = vadd.f32 0.0, %v2152
        %v2154 = vpop.f32.mrb[0].mxu0
        %v2155 = vadd.f32 0.0, %v2154
        %v2156 = vpop.f32.mrb[0].mxu0
        %v2157 = vadd.f32 0.0, %v2156
        %v2158 = vpop.f32.mrb[0].mxu0
        %v2159 = vadd.f32 0.0, %v2158
        %2160 = vmatprep.mubr.bf16.mxu0 0
        %2161 = vmatmul.mubr.bf16.gmra.mrb[0].mxu0 %v2091
        %v2162 = vpop.f32.mrb[0].mxu0
        %v2163 = vadd.f32 0.0, %v2162
        %v2164 = vpop.f32.mrb[0].mxu0
        %v2165 = vadd.f32 0.0, %v2164
        %v2166 = vpop.f32.mrb[0].mxu0
        %v2167 = vadd.f32 0.0, %v2166
        %v2168 = vpop.f32.mrb[0].mxu0
        %v2169 = vadd.f32 0.0, %v2168
        %2170 = vmatprep.mubr.bf16.mxu0 0
        %2171 = vmatmul.mubr.bf16.gmra.mrb[0].mxu0 %v2094
        %v2172 = vpop.f32.mrb[0].mxu0
        %v2173 = vadd.f32 0.0, %v2172
        %v2174 = vpop.f32.mrb[0].mxu0
        %v2175 = vadd.f32 0.0, %v2174
        %v2176 = vpop.f32.mrb[0].mxu0
        %v2177 = vadd.f32 0.0, %v2176
        %v2178 = vpop.f32.mrb[0].mxu0
        %v2179 = vadd.f32 0.0, %v2178
        %2180 = vmatprep.mubr.bf16.mxu0 0
        %2181 = vmatmul.mubr.bf16.gmra.mrb[0].mxu0 %v2097
        %v2182 = vpop.f32.mrb[0].mxu0
        %v2183 = vadd.f32 0.0, %v2182
        %v2184 = vpop.f32.mrb[0].mxu0
        %v2185 = vadd.f32 0.0, %v2184
        %v2186 = vpop.f32.mrb[0].mxu0
        %v2187 = vadd.f32 0.0, %v2186
        %v2188 = vpop.f32.mrb[0].mxu0
        %v2189 = vadd.f32 0.0, %v2188
        %2190 = vmatprep.mubr.bf16.mxu0 0
        %2191 = vmatmul.mubr.bf16.gmra.mrb[0].mxu0 %v2100
        %v2192 = vpop.f32.mrb[0].mxu0
        %v2193 = vadd.f32 0.0, %v2192
        %v2194 = vpop.f32.mrb[0].mxu0
        %v2195 = vadd.f32 0.0, %v2194
        %v2196 = vpop.f32.mrb[0].mxu0
        %v2197 = vadd.f32 0.0, %v2196
        %v2198 = vpop.f32.mrb[0].mxu0
        %v2199 = vadd.f32 0.0, %v2198
        %2200 = vmatprep.mubr.bf16.mxu0 0
        %2201 = vmatmul.mubr.bf16.gmra.mrb[0].mxu0 %v2103
        %v2202 = vpop.f32.mrb[0].mxu0
        %v2203 = vadd.f32 0.0, %v2202
        %v2204 = vpop.f32.mrb[0].mxu0
        %v2205 = vadd.f32 0.0, %v2204
        %v2206 = vpop.f32.mrb[0].mxu0
        %v2207 = vadd.f32 0.0, %v2206
        %v2208 = vpop.f32.mrb[0].mxu0
        %v2209 = vadd.f32 0.0, %v2208
        %2210 = vmatprep.mubr.bf16.mxu0 0
        %2211 = vmatmul.mubr.bf16.gmra.mrb[0].mxu0 %v2106
        %v2212 = vpop.f32.mrb[0].mxu0
        %v2213 = vadd.f32 0.0, %v2212
        %v2214 = vpop.f32.mrb[0].mxu0
        %v2215 = vadd.f32 0.0, %v2214
        %v2216 = vpop.f32.mrb[0].mxu0
        %v2217 = vadd.f32 0.0, %v2216
        %v2218 = vpop.f32.mrb[0].mxu0
        %v2219 = vadd.f32 0.0, %v2218
        %2220 = vdwg.mxu0
        %v2221 = vmax.f32 %v2143, %v2153
        %v2222 = vmax.f32 %v2147, %v2157
        %v2223 = vmax.f32 %v2221, %v2163
        %v2224 = vmax.f32 %v2222, %v2167
        %v2225 = vmax.f32 %v2223, %v2173
        %v2226 = vmax.f32 %v2224, %v2177
        %v2227 = vmax.f32 %v2225, %v2183
        %v2228 = vmax.f32 %v2226, %v2187
        %v2229 = vmax.f32 %v2227, %v2193
        %v2230 = vmax.f32 %v2228, %v2197
        %v2231 = vmax.f32 %v2229, %v2203
        %v2232 = vmax.f32 %v2230, %v2207
        %v2233 = vmax.f32 %v2231, %v2213
        %v2234 = vmax.f32 %v2232, %v2217
        %v2235 = vmax.f32 %v2233, %v2234
        %v2236 = vrot.slane %v2235, 4
        %v2237 = vmax.f32 %v2235, %v2236
        %v2238 = vrot.slane %v2237, 2
        %v2239 = vmax.f32 %v2237, %v2238
        %v2240 = vrot.slane %v2239, 1
        %v2241 = vmax.f32 %v2239, %v2240
        %v2242 = vmax.f32 %v2145, %v2155
        %v2243 = vmax.f32 %v2149, %v2159
        %v2244 = vmax.f32 %v2242, %v2165
        %v2245 = vmax.f32 %v2243, %v2169
        %v2246 = vmax.f32 %v2244, %v2175
        %v2247 = vmax.f32 %v2245, %v2179
        %v2248 = vmax.f32 %v2246, %v2185
        %v2249 = vmax.f32 %v2247, %v2189
        %v2250 = vmax.f32 %v2248, %v2195
        %v2251 = vmax.f32 %v2249, %v2199
        %v2252 = vmax.f32 %v2250, %v2205
        %v2253 = vmax.f32 %v2251, %v2209
        %v2254 = vmax.f32 %v2252, %v2215
        %v2255 = vmax.f32 %v2253, %v2219
        %v2256 = vmax.f32 %v2254, %v2255
        %v2257 = vrot.slane %v2256, 4
        %v2258 = vmax.f32 %v2256, %v2257
        %v2259 = vrot.slane %v2258, 2
        %v2260 = vmax.f32 %v2258, %v2259
        %v2261 = vrot.slane %v2260, 1
        %v2262 = vmax.f32 %v2260, %v2261
        %v2263 = vmax.f32 %v1853, %v2241
        %v2264 = vmax.f32 %v1854, %v2262
        %v2265 = vsub.f32 %v1853, %v2263
        %v2266 = vsub.f32 %v1854, %v2264
        %v2267 = vmul.f32 %v2265, 1.442695
        %v2268 = vpow.pop %v2267
        %v2269 = vmul.f32 %v2266, 1.442695
        %v2270 = vpow.pop %v2269
        %v2271 = vsub.f32 %v2143, %v2263
        %v2272 = vsub.f32 %v2145, %v2264
        %v2273 = vsub.f32 %v2147, %v2263
        %v2274 = vsub.f32 %v2149, %v2264
        %v2275 = vsub.f32 %v2153, %v2263
        %v2276 = vsub.f32 %v2155, %v2264
        %v2277 = vsub.f32 %v2157, %v2263
        %v2278 = vsub.f32 %v2159, %v2264
        %v2279 = vsub.f32 %v2163, %v2263
        %v2280 = vsub.f32 %v2165, %v2264
        %v2281 = vsub.f32 %v2167, %v2263
        %v2282 = vsub.f32 %v2169, %v2264
        %v2283 = vsub.f32 %v2173, %v2263
        %v2284 = vsub.f32 %v2175, %v2264
        %v2285 = vsub.f32 %v2177, %v2263
        %v2286 = vsub.f32 %v2179, %v2264
        %v2287 = vsub.f32 %v2183, %v2263
        %v2288 = vsub.f32 %v2185, %v2264
        %v2289 = vsub.f32 %v2187, %v2263
        %v2290 = vsub.f32 %v2189, %v2264
        %v2291 = vsub.f32 %v2193, %v2263
        %v2292 = vsub.f32 %v2195, %v2264
        %v2293 = vsub.f32 %v2197, %v2263
        %v2294 = vsub.f32 %v2199, %v2264
        %v2295 = vsub.f32 %v2203, %v2263
        %v2296 = vsub.f32 %v2205, %v2264
        %v2297 = vsub.f32 %v2207, %v2263
        %v2298 = vsub.f32 %v2209, %v2264
        %v2299 = vsub.f32 %v2213, %v2263
        %v2300 = vsub.f32 %v2215, %v2264
        %v2301 = vsub.f32 %v2217, %v2263
        %v2302 = vsub.f32 %v2219, %v2264
        %v2303 = vmul.f32 %v2271, 1.442695
        %v2304 = vpow.pop %v2303
        %v2305 = vmul.f32 %v2272, 1.442695
        %v2306 = vpow.pop %v2305
        %v2307 = vmul.f32 %v2273, 1.442695
        %v2308 = vpow.pop %v2307
        %v2309 = vmul.f32 %v2274, 1.442695
        %v2310 = vpow.pop %v2309
        %v2311 = vmul.f32 %v2275, 1.442695
        %v2312 = vpow.pop %v2311
        %v2313 = vmul.f32 %v2276, 1.442695
        %v2314 = vpow.pop %v2313
        %v2315 = vmul.f32 %v2277, 1.442695
        %v2316 = vpow.pop %v2315
        %v2317 = vmul.f32 %v2278, 1.442695
        %v2318 = vpow.pop %v2317
        %v2319 = vmul.f32 %v2279, 1.442695
        %v2320 = vpow.pop %v2319
        %v2321 = vmul.f32 %v2280, 1.442695
        %v2322 = vpow.pop %v2321
        %v2323 = vmul.f32 %v2281, 1.442695
        %v2324 = vpow.pop %v2323
        %v2325 = vmul.f32 %v2282, 1.442695
        %v2326 = vpow.pop %v2325
        %v2327 = vmul.f32 %v2283, 1.442695
        %v2328 = vpow.pop %v2327
        %v2329 = vmul.f32 %v2284, 1.442695
        %v2330 = vpow.pop %v2329
        %v2331 = vmul.f32 %v2285, 1.442695
        %v2332 = vpow.pop %v2331
        %v2333 = vmul.f32 %v2286, 1.442695
        %v2334 = vpow.pop %v2333
        %v2335 = vmul.f32 %v2287, 1.442695
        %v2336 = vpow.pop %v2335
        %v2337 = vmul.f32 %v2288, 1.442695
        %v2338 = vpow.pop %v2337
        %v2339 = vmul.f32 %v2289, 1.442695
        %v2340 = vpow.pop %v2339
        %v2341 = vmul.f32 %v2290, 1.442695
        %v2342 = vpow.pop %v2341
        %v2343 = vmul.f32 %v2291, 1.442695
        %v2344 = vpow.pop %v2343
        %v2345 = vmul.f32 %v2292, 1.442695
        %v2346 = vpow.pop %v2345
        %v2347 = vmul.f32 %v2293, 1.442695
        %v2348 = vpow.pop %v2347
        %v2349 = vmul.f32 %v2294, 1.442695
        %v2350 = vpow.pop %v2349
        %v2351 = vmul.f32 %v2295, 1.442695
        %v2352 = vpow.pop %v2351
        %v2353 = vmul.f32 %v2296, 1.442695
        %v2354 = vpow.pop %v2353
        %v2355 = vmul.f32 %v2297, 1.442695
        %v2356 = vpow.pop %v2355
        %v2357 = vmul.f32 %v2298, 1.442695
        %v2358 = vpow.pop %v2357
        %v2359 = vmul.f32 %v2299, 1.442695
        %v2360 = vpow.pop %v2359
        %v2361 = vmul.f32 %v2300, 1.442695
        %v2362 = vpow.pop %v2361
        %v2363 = vmul.f32 %v2301, 1.442695
        %v2364 = vpow.pop %v2363
        %v2365 = vmul.f32 %v2302, 1.442695
        %v2366 = vpow.pop %v2365
        %v2367 = vmul.f32 %v2268, %v2001
        %v2368 = vmul.f32 %v2270, %v2002
        %v2369 = vadd.f32 %v2304, %v2308
        %v2370 = vadd.f32 %v2369, %v2312
        %v2371 = vadd.f32 %v2370, %v2316
        %v2372 = vadd.f32 %v2371, %v2320
        %v2373 = vadd.f32 %v2372, %v2324
        %v2374 = vadd.f32 %v2373, %v2328
        %v2375 = vadd.f32 %v2374, %v2332
        %v2376 = vadd.f32 %v2375, %v2336
        %v2377 = vadd.f32 %v2376, %v2340
        %v2378 = vadd.f32 %v2377, %v2344
        %v2379 = vadd.f32 %v2378, %v2348
        %v2380 = vadd.f32 %v2379, %v2352
        %v2381 = vadd.f32 %v2380, %v2356
        %v2382 = vadd.f32 %v2381, %v2360
        %v2383 = vadd.f32 %v2382, %v2364
        %v2384 = vrot.slane %v2383, 4
        %v2385 = vadd.f32 %v2383, %v2384
        %v2386 = vrot.slane %v2385, 2
        %v2387 = vadd.f32 %v2385, %v2386
        %v2388 = vrot.slane %v2387, 1
        %v2389 = vadd.f32 %v2387, %v2388
        %v2390 = vadd.f32 %v2306, %v2310
        %v2391 = vadd.f32 %v2390, %v2314
        %v2392 = vadd.f32 %v2391, %v2318
        %v2393 = vadd.f32 %v2392, %v2322
        %v2394 = vadd.f32 %v2393, %v2326
        %v2395 = vadd.f32 %v2394, %v2330
        %v2396 = vadd.f32 %v2395, %v2334
        %v2397 = vadd.f32 %v2396, %v2338
        %v2398 = vadd.f32 %v2397, %v2342
        %v2399 = vadd.f32 %v2398, %v2346
        %v2400 = vadd.f32 %v2399, %v2350
        %v2401 = vadd.f32 %v2400, %v2354
        %v2402 = vadd.f32 %v2401, %v2358
        %v2403 = vadd.f32 %v2402, %v2362
        %v2404 = vadd.f32 %v2403, %v2366
        %v2405 = vrot.slane %v2404, 4
        %v2406 = vadd.f32 %v2404, %v2405
        %v2407 = vrot.slane %v2406, 2
        %v2408 = vadd.f32 %v2406, %v2407
        %v2409 = vrot.slane %v2408, 1
        %v2410 = vadd.f32 %v2408, %v2409
        %v2411 = vadd.f32 %v2367, %v2389
        %v2412 = vadd.f32 %v2368, %v2410
        %v2413 = vpack.c.bf16 %v2308, %v2304
        %v2414 = vpack.c.bf16 %v2310, %v2306
        %v2415 = vpack.c.bf16 %v2316, %v2312
        %v2416 = vpack.c.bf16 %v2318, %v2314
        %v2417 = vpack.c.bf16 %v2324, %v2320
        %v2418 = vpack.c.bf16 %v2326, %v2322
        %v2419 = vpack.c.bf16 %v2332, %v2328
        %v2420 = vpack.c.bf16 %v2334, %v2330
        %v2421 = vpack.c.bf16 %v2340, %v2336
        %v2422 = vpack.c.bf16 %v2342, %v2338
        %v2423 = vpack.c.bf16 %v2348, %v2344
        %v2424 = vpack.c.bf16 %v2350, %v2346
        %v2425 = vpack.c.bf16 %v2356, %v2352
        %v2426 = vpack.c.bf16 %v2358, %v2354
        %v2427 = vpack.c.bf16 %v2364, %v2360
        %v2428 = vpack.c.bf16 %v2366, %v2362
        %2429 = vmatprep.subr.bf16.mxu0 %v2414
        %2430 = vmatpush1.bf16.msra.mxu0 %v2413
        %2431 = vmatprep.subr.bf16.mxu0 %v2416
        %2432 = vmatpush1.bf16.msra.mxu0 %v2415
        %2433 = vmatprep.subr.bf16.mxu0 %v2418
        %2434 = vmatpush1.bf16.msra.mxu0 %v2417
        %2435 = vmatprep.subr.bf16.mxu0 %v2420
        %2436 = vmatpush1.bf16.msra.mxu0 %v2419
        %2437 = vmatprep.subr.bf16.mxu0 %v2422
        %2438 = vmatpush1.bf16.msra.mxu0 %v2421
        %2439 = vmatprep.subr.bf16.mxu0 %v2424
        %2440 = vmatpush1.bf16.msra.mxu0 %v2423
        %2441 = vmatprep.subr.bf16.mxu0 %v2426
        %2442 = vmatpush1.bf16.msra.mxu0 %v2425
        %2443 = vmatprep.subr.bf16.mxu0 %v2428
        %2444 = vmatpush1.bf16.msra.mxu0 %v2427
        %2445 = vmatprep.subr.bf16.mxu0 0
        %2446 = vmatpush1.bf16.msra.mxu0 0
        %2447 = vmatprep.subr.bf16.mxu0 0
        %2448 = vmatpush1.bf16.msra.mxu0 0
        %2449 = vmatprep.subr.bf16.mxu0 0
        %2450 = vmatpush1.bf16.msra.mxu0 0
        %2451 = vmatprep.subr.bf16.mxu0 0
        %2452 = vmatpush1.bf16.msra.mxu0 0
        %2453 = vmatprep.subr.bf16.mxu0 0
        %2454 = vmatpush1.bf16.msra.mxu0 0
        %2455 = vmatprep.subr.bf16.mxu0 0
        %2456 = vmatpush1.bf16.msra.mxu0 0
        %2457 = vmatprep.subr.bf16.mxu0 0
        %2458 = vmatpush1.bf16.msra.mxu0 0
        %2459 = vmatprep.subr.bf16.mxu0 0
        %2460 = vmatpush1.bf16.msra.mxu0 0
        %2461 = vmatprep.mubr.bf16.mxu0 0
        %2462 = vmatmul.mubr.bf16.gmra.mrb[0].mxu0 %v2067
        %v2463 = vpop.f32.mrb[0].mxu0
        %v2464 = vadd.f32 0.0, %v2463
        %v2465 = vpop.f32.mrb[0].mxu0
        %v2466 = vadd.f32 0.0, %v2465
        %v2467 = vpop.f32.mrb[0].mxu0
        %v2468 = vpop.f32.mrb[0].mxu0
        %2469 = vdwg.mxu0
        %v2470 = vmul.f32 %v2268, %v2062
        %v2471 = vmul.f32 %v2270, %v2063
        %v2472 = vadd.f32 %v2470, %v2464
        %v2473 = vadd.f32 %v2471, %v2466
        %v2474 = vrcp.pop %v2411
        %v2475 = vrcp.pop %v2412
        %v2476 = vmul.f32 %v2472, %v2474
        %v2477 = vmul.f32 %v2473, %v2475
        %v2478 = vld [vmem:[%s9] sm:$0xff]
        %v2479 = vpack.c.bf16 %v2478, %v2478
        %v2480 = vpack.c.bf16 %v2476, %v2476
        %v2481 = vpack.c.bf16 %v2477, %v2477
        %v2482 = vld [vmem:[%s10] sm:$0xff]
        %2484 = vset.pattern.permute.xlu0 0
        %2485 = vperm.xlu0 %2484, %v2482
        %v2486 = vpop.permute.xlu0 %2485
        %2488 = vxpose.xlu0.c.b16.start [1/8] %v2479, 128
        %2489 = vxpose.xlu0.c.b16.cont [2/8] 0, 128
        %2490 = vxpose.xlu0.c.b16.cont [3/8] 0, 128
        %2491 = vxpose.xlu0.c.b16.cont [4/8] 0, 128
        %2492 = vxpose.xlu0.c.b16.cont [5/8] 0, 128
        %2493 = vxpose.xlu0.c.b16.cont [6/8] 0, 128
        %2494 = vxpose.xlu0.c.b16.cont [7/8] 0, 128
        %2495 = vxpose.xlu0.c.b16.end [8/8] 0, 128
        %v2496 = vpop.trf.xlu0
        %v2497 = vpop.trf.xlu0
        %v2498 = vpop.trf.xlu0
        %v2499 = vpop.trf.xlu0
        %v2500 = vpop.trf.xlu0
        %v2501 = vpop.trf.xlu0
        %v2502 = vpop.trf.xlu0
        %v2503 = vpop.trf.xlu0
        %v2505 = vsel %vm780, %v2496, 0
        %v2508 = vsel %vm784, %v2480, 0
        %v2511 = vsel %vm784, %v2481, 0
        %2513 = vmatprep.subr.bf16.mxu0 %v2511
        %2514 = vmatpush1.bf16.msra.mxu0 %v2508
        %2515 = vmatprep.subr.bf16.mxu0 0
        %2516 = vmatpush1.bf16.msra.mxu0 0
        %2517 = vmatprep.subr.bf16.mxu0 0
        %2518 = vmatpush1.bf16.msra.mxu0 0
        %2519 = vmatprep.subr.bf16.mxu0 0
        %2520 = vmatpush1.bf16.msra.mxu0 0
        %2521 = vmatprep.subr.bf16.mxu0 0
        %2522 = vmatpush1.bf16.msra.mxu0 0
        %2523 = vmatprep.subr.bf16.mxu0 0
        %2524 = vmatpush1.bf16.msra.mxu0 0
        %2525 = vmatprep.subr.bf16.mxu0 0
        %2526 = vmatpush1.bf16.msra.mxu0 0
        %2527 = vmatprep.subr.bf16.mxu0 0
        %2528 = vmatpush1.bf16.msra.mxu0 0
        %2529 = vmatprep.subr.bf16.mxu0 0
        %2530 = vmatpush1.bf16.msra.mxu0 0
        %2531 = vmatprep.subr.bf16.mxu0 0
        %2532 = vmatpush1.bf16.msra.mxu0 0
        %2533 = vmatprep.subr.bf16.mxu0 0
        %2534 = vmatpush1.bf16.msra.mxu0 0
        %2535 = vmatprep.subr.bf16.mxu0 0
        %2536 = vmatpush1.bf16.msra.mxu0 0
        %2537 = vmatprep.subr.bf16.mxu0 0
        %2538 = vmatpush1.bf16.msra.mxu0 0
        %2539 = vmatprep.subr.bf16.mxu0 0
        %2540 = vmatpush1.bf16.msra.mxu0 0
        %2541 = vmatprep.subr.bf16.mxu0 0
        %2542 = vmatpush1.bf16.msra.mxu0 0
        %2543 = vmatprep.subr.bf16.mxu0 0
        %2544 = vmatpush1.bf16.msra.mxu0 0
        %2545 = vmatprep.mubr.bf16.mxu0 0
        %2546 = vmatmul.mubr.bf16.gmra.mrb[0].mxu0 %v2505
        %v2547 = vpop.f32.mrb[0].mxu0
        %v2548 = vadd.f32 %v2486, %v2547
        %v2549 = vpop.f32.mrb[0].mxu0
        %v2550 = vadd.f32 %v2486, %v2549
        %v2551 = vpop.f32.mrb[0].mxu0
        %v2552 = vpop.f32.mrb[0].mxu0
        %2553 = vdwg.mxu0
        %v2554 = vadd.f32 %v2548, %v732
        %v2555 = vadd.f32 %v2550, %v733
        %2556 = vst [vmem:[%s416] sm:$0xff] %v2554
        %2557 = vst [vmem:[%s416 + $0x8] sm:$0xff] %v2555
        %s2558 = sand.u32 %s286, 1
        %s2559 = scalar_lea.sflag [#allocation6], %s2558
        %s2560 = sand.u32 %s286, 1
        %s2561 = smul.addr %s2560, 16
        %s2562 = scalar_lea.vmem [#allocation7], %s2561
        // Predicated region
        $region73: #{tpu_custom_call.1} parent=63 // pred_check
          %p2563 = pneg %p296
        $region74: #{tpu_custom_call.1} parent=63 // pred_check_branch
          %2565 = sbr.rel (%p2563) target = $region76
        $region75: #{tpu_custom_call.1} parent=63 // pred_region
          %s2566 = smul.u32 2, %s33
          %s2568 = ssub.s32 256, 256
          %2569 = vsyncadd %s2559, %s2568
          %s2570 = smul.addr %s32, 4
          %s2571 = sadd.s32 %s2566, %s2570
          %s2572 = smul.addr %s2571, 128
          %s2573 = scalar_lea.hbm %s11, %s2572
          %s2575 = sshll.u32 %s2562, 4
          %s2576 = int_to_ptr.vmem [resolvable:$true] %s2575
          %2578 = dma.vmem_to_hbm [thread:$0]  %s2576, 256, %s2573, %s2559
        $region76: #{tpu_custom_call.1} parent=63 // pred_fallthru
          _
      $region64: #{tpu_custom_call.1} parent=5 // pred_fallthru
        _
      %p2579 = scmp.le.s32.totalorder 2, %s23
      // Predicated region
      $region77: #{tpu_custom_call.1} parent=5 // pred_check
        %p2580 = pneg %p2579
      $region78: #{tpu_custom_call.1} parent=5 // pred_check_branch
        %2582 = sbr.rel (%p2580) target = $region80
      $region79: #{tpu_custom_call.1} parent=5 // pred_region
        %s2583 = ssub.s32 %s23, 2
        // Predicated region
        $region81: #{tpu_custom_call.1} parent=79 // pred_check
          %p2584 = pneg %p302
        $region82: #{tpu_custom_call.1} parent=79 // pred_check_branch
          %2586 = sbr.rel (%p2584) target = $region84
        $region83: #{tpu_custom_call.1} parent=79 // pred_region
          %s2587 = sand.u32 %s287, 1
          %s2588 = scalar_lea.sflag [#allocation6], %s2587
          %s2589 = sand.u32 %s287, 1
          %s2590 = smul.addr %s2589, 16
          %s2591 = scalar_lea.vmem [#allocation7], %s2590
          %2592 = dma.done %s2588, 256
        $region84: #{tpu_custom_call.1} parent=79 // pred_fallthru
          _
      $region80: #{tpu_custom_call.1} parent=5 // pred_fallthru
        _
    $region6: #{tpu_custom_call.1} parent=1 // loop_footer
      %s27 = sadd.s32 1, %s23
    $region7: #{tpu_custom_call.1} parent=1 // loop_footer_branch
      %22 = sbr.rel target = $region3
    $region8: #{tpu_custom_call.1} parent=1 // loop_exit
      _
    %2593 = vsyncpa [#allocation5], 1
    %s2594 = scalar_lea.sflag [#allocation5], 1
    %2595 = vsyncpa %s2594, 1
    %2596 = vsyncpa [#allocation6], 1
    %s2597 = scalar_lea.sflag [#allocation6], 1
    %2598 = vsyncpa %s2597, 1

</llo_original>
